<compile_context>
chip_gen: v7x
topology: tpu7x:2x2x1
jax: 0.10.0
libtpu: 0.0.40
codegen_flags: <defaults>
</compile_context>

<pallas_src>
import functools

import jax
import jax.numpy as jnp
from jax.experimental import pallas as pl
from jax.experimental.pallas import tpu as pltpu

_LANES = 384                       # 128 points * 3 interleaved channels per row
_ROWS_PER_BLOCK = 2048             # 262144 points per grid step (~3 MiB / buffer)
_MIN_POINTS_FOR_PALLAS = 16384     # below this, fused XLA matmul is already optimal
_VMEM_LIMIT_BYTES = 32 * 1024 * 1024


def _ego_flow_kernel(w_ref, flow_ref, out_ref):
    """One (TM, 384) tile of interleaved xyz flow vectors.

    w_ref   : (5, 384) VMEM  -- per-lane weights for lane shifts -2..+2
    flow_ref: (TM, 384) VMEM -- interleaved global flow (x0 y0 z0 x1 y1 z1 ...)
    out_ref : (TM, 384) VMEM -- interleaved ego flow
    """
    x = flow_ref[...]
    # out[j] = sum_s w[s, j] * roll(x, s)[j]  ==  (flow_xyz @ inv_rot.T) interleaved.
    acc = w_ref[2:3, :] * x                                               # shift  0
    acc += w_ref[0:1, :] * pltpu.roll(x, shift=(-2) % _LANES, axis=1)     # shift -2
    acc += w_ref[1:2, :] * pltpu.roll(x, shift=(-1) % _LANES, axis=1)     # shift -1
    acc += w_ref[3:4, :] * pltpu.roll(x, shift=1, axis=1)                 # shift +1
    acc += w_ref[4:5, :] * pltpu.roll(x, shift=2, axis=1)                 # shift +2
    out_ref[...] = acc.astype(out_ref.dtype)


def _roll_weights(inv_rot):
    """(5, 384) per-lane weights.

    Row s (s in -2..2) at lane j holds inv_rot[c, c - s] when 0 <= c - s <= 2
    (c = j % 3 is the output channel of lane j), else 0.  With jnp.roll
    semantics roll(x, s)[j] = x[j - s], this makes the kernel compute
    out[3p + c] = sum_k inv_rot[c, k] * flow[3p + k].  All circular-wrap lanes
    get zero weight, so row boundaries never contaminate results.
    """
    c = jnp.arange(_LANES, dtype=jnp.int32) % 3          # (384,)
    shifts = jnp.arange(-2, 3, dtype=jnp.int32)          # (5,)
    k = c[None, :] - shifts[:, None]                     # (5, 384): c - s
    valid = (k >= 0) & (k <= 2)
    gathered = inv_rot[c[None, :], jnp.clip(k, 0, 2)]
    return jnp.where(valid, gathered, 0.0).astype(jnp.float32)


def _round_up(x, m):
    return ((x + m - 1) // m) * m


@functools.partial(jax.jit,
                   static_argnames=("rows_per_block", "min_points_for_pallas"))
def global_to_ego_flow(global_pc, global_flow, ego_to_global, *,
                       rows_per_block=_ROWS_PER_BLOCK,
                       min_points_for_pallas=_MIN_POINTS_FOR_PALLAS):
    """JAX/Pallas equivalent of BaseModel.global_to_ego_flow.

    global_pc:     (N, 3) -- shape-checked only; its contribution cancels analytically.
    global_flow:   (N, 3)
    ego_to_global: (4, 4)
    returns ego_flow: (N, 3)
    """
    assert global_pc.shape[1] == 3, f"Expected Nx3 point cloud, got {global_pc.shape}"
    assert global_flow.shape[1] == 3, f"Expected Nx3 global flow, got {global_flow.shape}"
    assert ego_to_global.shape == (4, 4), (
        f"Expected 4x4 transformation matrix, got {ego_to_global.shape}")
    assert global_pc.shape == global_flow.shape, (
        f"Expected same shape, got {global_pc.shape} != {global_flow.shape}")
    del global_pc  # cancels analytically (see module docstring)

    n = global_flow.shape[0]
    dtype = global_flow.dtype

    # Full 4x4 inverse (matches torch.inverse in the reference for any
    # invertible pose); only its top-left 3x3 block survives the cancellation.
    inv_rot = jnp.linalg.inv(ego_to_global.astype(jnp.float32))[:3, :3]

    # Small or non-128-aligned point counts: a fused XLA matmul is already at
    # the HBM roofline and skips all launch / layout overhead.
    if n < min_points_for_pallas or n % 128 != 0:
        return (global_flow.astype(jnp.float32) @ inv_rot.T).astype(dtype)

    rows = n // 128
    # Free (bitcast) row-major view: 128 interleaved xyz triplets per row.
    flow2d = global_flow.reshape(rows, _LANES)
    weights = _roll_weights(inv_rot)

    # Tile: as large as VMEM comfortably allows, but keep >= 2 grid steps so
    # both v7x TensorCores get work (the single grid axis is "parallel").
    if rows >= 16:
        tm = min(rows_per_block, _round_up(-(-rows // 2), 8))
    else:
        tm = rows
    grid = (pl.cdiv(rows, tm),)

    out2d = pl.pallas_call(
        _ego_flow_kernel,
        out_shape=jax.ShapeDtypeStruct((rows, _LANES), dtype),
        grid=grid,
        in_specs=[
            pl.BlockSpec((5, _LANES), lambda i: (0, 0)),    # weights (grid-invariant)
            pl.BlockSpec((tm, _LANES), lambda i: (i, 0)),   # flow tile
        ],
        out_specs=pl.BlockSpec((tm, _LANES), lambda i: (i, 0)),
        compiler_params=pltpu.CompilerParams(
            dimension_semantics=("parallel",),
            vmem_limit_bytes=_VMEM_LIMIT_BYTES),
        cost_estimate=pl.CostEstimate(
            flops=15 * n, transcendentals=0,
            bytes_accessed=2 * 3 * 4 * n + 5 * _LANES * 4),
    )(weights, flow2d)

    return out2d.reshape(n, 3)


def _reference(global_pc, global_flow, ego_to_global):
    """Pure-JAX reference mirroring the PyTorch code line by line."""
    inv = jnp.linalg.inv(ego_to_global)

    def transform_pc(pc, m):
        return pc @ m[:3, :3].T + m[:3, 3]

    flowed_global_pc = global_pc + global_flow
    ego_pc = transform_pc(global_pc, inv)
    ego_flowed_pc = transform_pc(flowed_global_pc, inv)
    return ego_flowed_pc - ego_pc


class BaseModel:
    """Minimal JAX analogue of the abstract PyTorch BaseModel."""

    # TODO(synk): forward()/forward_single() dispatch over
    # BucketedSceneFlowInputSequence dataclasses and contain no tensor math;
    # only the shared numeric utility global_to_ego_flow is ported.

    def global_to_ego_flow(self, global_pc, global_flow, ego_to_global):
        return global_to_ego_flow(global_pc, global_flow, ego_to_global)


if __name__ == "__main__":
    key = jax.random.PRNGKey(0)
    k_pc, k_flow = jax.random.split(key, 2)

    # 32768 points = 256 (8,128)-aligned rows of interleaved xyz; < 400 KiB/array.
    N = 128 * 256
    global_pc = jax.random.normal(k_pc, (N, 3), dtype=jnp.float32) * 10.0
    global_flow = jax.random.normal(k_flow, (N, 3), dtype=jnp.float32) * 0.5

    # Deterministic ego_to_global: scaled rotation about z + translation
    # (mild scale exercises the full 4x4-inverse path, not just pure SE(3)).
    theta = 0.3
    c, s = jnp.cos(theta), jnp.sin(theta)
    rot = 1.05 * jnp.array([[c, -s, 0.0],
                            [s,  c, 0.0],
                            [0.0, 0.0, 1.0]], dtype=jnp.float32)
    trans = jnp.array([1.5, -2.0, 0.25], dtype=jnp.float32)
    ego_to_global = jnp.eye(4, dtype=jnp.float32)
    ego_to_global = ego_to_global.at[:3, :3].set(rot).at[:3, 3].set(trans)

    ref = _reference(global_pc, global_flow, ego_to_global)

    model = BaseModel()

    # Main Pallas path (default tiles -> 2 parallel grid steps of 128 rows).
    ego_flow = jax.block_until_ready(
        model.global_to_ego_flow(global_pc, global_flow, ego_to_global))
    assert ego_flow.shape == (N, 3), ego_flow.shape
    assert jnp.allclose(ego_flow, ref, atol=1e-4, rtol=1e-4), (
        float(jnp.max(jnp.abs(ego_flow - ref))))

    # Multi-step grid with a ragged trailing block (rows=256, tile=40 rows).
    ego_flow_small_tile = jax.block_until_ready(
        global_to_ego_flow(global_pc, global_flow, ego_to_global,
                           rows_per_block=40))
    assert jnp.allclose(ego_flow_small_tile, ref, atol=1e-4, rtol=1e-4), (
        float(jnp.max(jnp.abs(ego_flow_small_tile - ref))))

    # Small / non-128-aligned N takes the fused XLA fallback path.
    M = 200
    ref_small = _reference(global_pc[:M], global_flow[:M], ego_to_global)
    ego_flow_small = jax.block_until_ready(
        global_to_ego_flow(global_pc[:M], global_flow[:M], ego_to_global))
    assert ego_flow_small.shape == (M, 3), ego_flow_small.shape
    assert jnp.allclose(ego_flow_small, ref_small, atol=1e-4, rtol=1e-4), (
        float(jnp.max(jnp.abs(ego_flow_small - ref_small))))

    print("KERNEL_OK")
</pallas_src>

<mosaic_0001>
module attributes {stable_mosaic.version = 11 : i64} {
  func.func @_ego_flow_kernel(%arg0: i32, %arg1: memref<5x384xf32, #tpu.memory_space<vmem>>, %arg2: memref<128x384xf32, #tpu.memory_space<vmem>>, %arg3: memref<128x384xf32, #tpu.memory_space<vmem>>) attributes {dimension_semantics = [#tpu.dimension_semantics<parallel>], iteration_bounds = array<i64: 2>, scalar_prefetch = 0 : i64, scratch_operands = 0 : i64, tpu.core_type = #tpu.core_type<tc>, window_params = [{pipeline_mode = #tpu.pipeline_mode<synchronous>, transform_indices = @transform_0, window_bounds = array<i64: 5, 384>}, {transform_indices = @transform_1, window_bounds = array<i64: 128, 384>}, {transform_indices = @transform_2, window_bounds = array<i64: 128, 384>}]} {
    %c0 = arith.constant 0 : index
    %c0_0 = arith.constant 0 : index
    %0 = vector.load %arg2[%c0, %c0_0] : memref<128x384xf32, #tpu.memory_space<vmem>>, vector<128x384xf32>
    %c2 = arith.constant 2 : index
    %c0_1 = arith.constant 0 : index
    %1 = vector.load %arg1[%c2, %c0_1] : memref<5x384xf32, #tpu.memory_space<vmem>>, vector<1x384xf32>
    %2 = vector.broadcast %1 : vector<1x384xf32> to vector<128x384xf32>
    %3 = arith.mulf %2, %0 : vector<128x384xf32>
    %c0_2 = arith.constant 0 : index
    %c0_3 = arith.constant 0 : index
    %4 = vector.load %arg1[%c0_2, %c0_3] : memref<5x384xf32, #tpu.memory_space<vmem>>, vector<1x384xf32>
    %c382_i32 = arith.constant 382 : i32
    %5 = tpu.dynamic_rotate %0 by %c382_i32 dim 1 : vector<128x384xf32>, i32 -> vector<128x384xf32>
    %6 = vector.broadcast %4 : vector<1x384xf32> to vector<128x384xf32>
    %7 = arith.mulf %6, %5 : vector<128x384xf32>
    %8 = arith.addf %3, %7 : vector<128x384xf32>
    %c1 = arith.constant 1 : index
    %c0_4 = arith.constant 0 : index
    %9 = vector.load %arg1[%c1, %c0_4] : memref<5x384xf32, #tpu.memory_space<vmem>>, vector<1x384xf32>
    %c383_i32 = arith.constant 383 : i32
    %10 = tpu.dynamic_rotate %0 by %c383_i32 dim 1 : vector<128x384xf32>, i32 -> vector<128x384xf32>
    %11 = vector.broadcast %9 : vector<1x384xf32> to vector<128x384xf32>
    %12 = arith.mulf %11, %10 : vector<128x384xf32>
    %13 = arith.addf %8, %12 : vector<128x384xf32>
    %c3 = arith.constant 3 : index
    %c0_5 = arith.constant 0 : index
    %14 = vector.load %arg1[%c3, %c0_5] : memref<5x384xf32, #tpu.memory_space<vmem>>, vector<1x384xf32>
    %c1_i32 = arith.constant 1 : i32
    %15 = tpu.dynamic_rotate %0 by %c1_i32 dim 1 : vector<128x384xf32>, i32 -> vector<128x384xf32>
    %16 = vector.broadcast %14 : vector<1x384xf32> to vector<128x384xf32>
    %17 = arith.mulf %16, %15 : vector<128x384xf32>
    %18 = arith.addf %13, %17 : vector<128x384xf32>
    %c4 = arith.constant 4 : index
    %c0_6 = arith.constant 0 : index
    %19 = vector.load %arg1[%c4, %c0_6] : memref<5x384xf32, #tpu.memory_space<vmem>>, vector<1x384xf32>
    %c2_i32 = arith.constant 2 : i32
    %20 = tpu.dynamic_rotate %0 by %c2_i32 dim 1 : vector<128x384xf32>, i32 -> vector<128x384xf32>
    %21 = vector.broadcast %19 : vector<1x384xf32> to vector<128x384xf32>
    %22 = arith.mulf %21, %20 : vector<128x384xf32>
    %23 = arith.addf %18, %22 : vector<128x384xf32>
    %c0_7 = arith.constant 0 : index
    %c0_8 = arith.constant 0 : index
    %24 = vector.load %arg3[%c0_7, %c0_8] : memref<128x384xf32, #tpu.memory_space<vmem>>, vector<128x384xf32>
    tpu.vector_store %arg3[%c0_7, %c0_8], %23 {strides = array<i32>} : memref<128x384xf32, #tpu.memory_space<vmem>>, vector<128x384xf32>,
    return
  }
  func.func @transform_0(%arg0: i32) -> (i32, i32) {
    %c0_i32 = arith.constant 0 : i32
    %c0_i32_0 = arith.constant 0 : i32
    %c0_i32_1 = arith.constant 0 : i32
    return %c0_i32, %c0_i32_0 : i32, i32
  }
  func.func @transform_1(%arg0: i32) -> (i32, i32) {
    %c0_i32 = arith.constant 0 : i32
    %c0_i32_0 = arith.constant 0 : i32
    return %arg0, %c0_i32 : i32, i32
  }
  func.func @transform_2(%arg0: i32) -> (i32, i32) {
    %c0_i32 = arith.constant 0 : i32
    %c0_i32_0 = arith.constant 0 : i32
    return %arg0, %c0_i32 : i32, i32
  }
}

</mosaic_0001>

<llo_original>
// kernel: custom-call.11
$region0: #{custom-call.11}
  %s0 = inlined_call_operand.hbm [shape: f32[4,4], index: 0, kind: input, shape index: {}]
  %s1 = inlined_call_operand.vmem [shape: f32[4,4], index: 1, kind: output, shape index: {0}]
  %s2 = inlined_call_operand.hbm [shape: s32[4], index: 2, kind: output, shape index: {1}]
  %s3 = inlined_call_operand.vmem [shape: s32[4], index: 3, kind: output, shape index: {2}]
  %4 = xla_tuple %s1, %s2, %s3
  $region1: #{custom-call.11} parent=0
    #allocation0 [shape = 'u8[4096]{0}', space=vmem, size = 0x1000, scoped, tag = 'operand span for operand 0']
    #allocation1 [shape = 'u8[2048]{0}', space=vmem, size = 0x800, scoped, tag = 'packed  for operand 0']
    #allocation2 [shape = 's32[1]{0}', space=sflag, size = 0x4, scoped, tag = 'scoped memory for custom-call.11']
    #allocation3 [shape = 's32[1]{0}', space=sflag, size = 0x4, scoped, tag = 'scoped memory for custom-call.11']
    #allocation4 [shape = 'u8[4096]{0}', space=vmem, size = 0x1000, scoped, tag = 'operand span for operand 1']
    #allocation5 [shape = 'u8[2048]{0}', space=vmem, size = 0x800, scoped, tag = 'packed  for operand 1']
    #allocation6 [shape = 'u8[4096]{0}', space=vmem, size = 0x1000, scoped, tag = 'operand span for operand 2']
    #allocation7 [shape = 'u8[512]{0}', space=vmem, size = 0x400, scoped, tag = 'packed  for operand 2']
    #allocation8 [shape = 'u8[4096]{0}', space=vmem, size = 0x1000, scoped, tag = 'operand span for operand 3']
    #allocation9 [shape = 'u8[512]{0}', space=vmem, size = 0x400, scoped, tag = 'packed  for operand 3']
    #allocation10 [shape = 's32[4,128]{1,0}', space=vmem, size = 0x1000, scoped, tag = 'scratch for permutations']
    %5 = vsyncpa [#allocation2], 0
    %6 = vsyncpa [#allocation3], 0
    %s8 = ssub.s32 64, 64
    %9 = vsyncadd [#allocation2], %s8
    %s10 = sshll.u32 [#allocation1], 4
    %s11 = int_to_ptr.vmem [resolvable:$true] %s10
    %13 = dma.hbm_to_vmem [thread:$0]  %s0, 64, %s11, [#allocation2]
    %14 = dma.done [#allocation2], 64
    %s16 = sshllo.u32 0, 4
    %v17 = vld [vmem:[#allocation1] sm:%s16]
    %18 = vst [vmem:[#allocation0] sm:%s16] %v17
    %v19 = vld [vmem:[#allocation0] sm:$0xff]
    %20 = vst [vmem:[#allocation4] sm:$0xff] %v19
    %21 = vst [vmem:[#allocation6] sm:$0x1] 0
    %v22 = vlaneseq
    %v23 = vshrl.u32 %v22, 7
    %v24 = vmov %v23
    %26 = vst [vmem:[#allocation10] sm:$0xff] %v24
    loop: start=0, step=1, limit=4
    $region3: #{custom-call.11} parent=1 // loop_pre_header
      _
    $region4: #{custom-call.11} parent=1 // loop_header
      %s28 = sphi 0, %s32
      %p29 = scmp.ge.s32.totalorder %s28, 4
    $region5: #{custom-call.11} parent=1 // loop_header_branch
      %31 = sbr.rel (%p29) target = $region9
    $region6: #{custom-call.11} parent=1 // loop_body
      %v33 = vstv %s28
      %v34 = vlaneseq
      %v35 = vshrl.u32 %v34, 7
      %v36 = vmov %v35
      %v37 = vld [vmem:[#allocation4] sm:$0xff]
      %v38 = vand.u32 2147483647, %v37
      %v40 = vstv %s28
      %vm41 = vcmp.ge.s32.totalorder %v36, %v40
      %vm42 = vcmp.lt.s32.totalorder %v36, 4
      %vm43 = vmand %vm41, %vm42
      %vm44 = vcmp.lt.f32.partialorder -inf, %v38
      %vm45 = vmand %vm43, %vm44
      %v46 = vsel %vm45, %v36, %v33
      %v47 = vsel %vm45, %v38, -inf
      %v48 = vrot.slane %v47, 1
      %v49 = vrot.slane %v46, 1
      %vm50 = vcmp.ge.f32.partialorder %v48, %v47
      %v51 = vsel %vm50, %v48, %v47
      %v52 = vsel %vm50, %v49, %v46
      %v53 = vrot.slane %v48, 1
      %v54 = vrot.slane %v49, 1
      %vm55 = vcmp.ge.f32.partialorder %v53, %v51
      %v56 = vsel %vm55, %v53, %v51
      %v57 = vsel %vm55, %v54, %v52
      %v58 = vrot.slane %v53, 1
      %v59 = vrot.slane %v54, 1
      %vm60 = vcmp.ge.f32.partialorder %v58, %v56
      %v61 = vsel %vm60, %v58, %v56
      %v62 = vsel %vm60, %v59, %v57
      %v63 = vrot.slane %v58, 1
      %v64 = vrot.slane %v59, 1
      %vm65 = vcmp.ge.f32.partialorder %v63, %v61
      %v66 = vsel %vm65, %v63, %v61
      %v67 = vsel %vm65, %v64, %v62
      %v68 = vrot.slane %v63, 1
      %v69 = vrot.slane %v64, 1
      %vm70 = vcmp.ge.f32.partialorder %v68, %v66
      %v71 = vsel %vm70, %v68, %v66
      %v72 = vsel %vm70, %v69, %v67
      %v73 = vrot.slane %v68, 1
      %v74 = vrot.slane %v69, 1
      %vm75 = vcmp.ge.f32.partialorder %v73, %v71
      %v76 = vsel %vm75, %v73, %v71
      %v77 = vsel %vm75, %v74, %v72
      %v78 = vrot.slane %v73, 1
      %v79 = vrot.slane %v74, 1
      %vm80 = vcmp.ge.f32.partialorder %v78, %v76
      %v81 = vsel %vm80, %v78, %v76
      %v82 = vsel %vm80, %v79, %v77
      %s83 = ssub.s32 128, %s28
      %84 = vrot.lane.b32.xlu0 %v82, %s83
      %v85 = vpop.permute.xlu0 %84
      %s86 = vtos %v85
      %v87 = vstv %s28
      %v88 = vlaneseq
      %v89 = vand.u32 %v88, 127
      %vm90 = vcmp.eq.s32.totalorder %v89, %v87
      %v91 = vstv %s86
      %v92 = vld [vmem:[#allocation6] ss:$0 sm:$0xff]
      %v93 = vsel %vm90, %v91, %v92
      %94 = vst [vmem:[#allocation6] sm:$0x1] %v93
      %s95 = scalar_lea.vmem [#allocation4], %s28
      %s96 = scalar_lea.vmem [#allocation4], %s86
      %v97 = vld [vmem:[%s95] ss:$0 sm:$0xff]
      %v98 = vld [vmem:[%s96] ss:$0 sm:$0xff]
      %99 = vst [vmem:[%s96] sm:$0x1] %v97
      %100 = vst [vmem:[%s95] sm:$0x1] %v98
      %s101 = scalar_lea.vmem [#allocation10], %s28
      %s102 = scalar_lea.vmem [#allocation10], %s86
      %v103 = vld [vmem:[%s101] ss:$0 sm:$0xff]
      %v104 = vld [vmem:[%s102] ss:$0 sm:$0xff]
      %105 = vst [vmem:[%s102] sm:$0x1] %v103
      %106 = vst [vmem:[%s101] sm:$0x1] %v104
      %vm107 = vcmp.ne.f32.partialorder %v98, 0.0
      %vm108 = vmand %vm90, %vm107
      %v109 = vsel %vm108, %v98, 1.0
      %v110 = vlaneseq
      %v111 = vand.u32 %v110, 127
      %v112 = vstv %s28
      %vm113 = vcmp.gt.s32.totalorder %v111, %v112
      %v114 = vsel %vm113, %v98, 0.0
      %v115 = vlaneseq
      %v116 = vshrl.u32 %v115, 7
      %v117 = vmov %v116
      %v118 = vld [vmem:[#allocation4] sm:$0xff]
      %v120 = vstv %s28
      %vm121 = vcmp.gt.s32.totalorder %v117, %v120
      %v122 = vsel %vm121, %v109, 1.0
      %v123 = vrcp.pop %v122
      %v124 = vmul.f32 %v118, %v123
      %vm125 = vmand %vm121, %vm90
      %v126 = vsel %vm125, %v124, 0.0
      %127 = vadd.xlane.f32.xlu0 %v126
      %v128 = vpop.xlane.xlu0 %127
      %v129 = vmul.f32 %v128, %v114
      %v130 = vsub.f32 %v124, %v129
      %131 = vst [vmem:[#allocation4] sm:$0xff] %v130
    $region7: #{custom-call.11} parent=1 // loop_footer
      %s32 = sadd.s32 1, %s28
    $region8: #{custom-call.11} parent=1 // loop_footer_branch
      %27 = sbr.rel target = $region4
    $region9: #{custom-call.11} parent=1 // loop_exit
      _
    %v132 = vld [vmem:[#allocation10] sm:$0xff]
    %s133 = scalar_lea.vmem [#allocation10], 8
    %s134 = scalar_lea.vmem [#allocation10], 16
    %s135 = scalar_lea.vmem [#allocation10], 24
    %s136 = scalar_lea.vmem [#allocation10], 32
    %s137 = scalar_lea.vmem [#allocation10], 40
    %s138 = scalar_lea.vmem [#allocation10], 48
    %s139 = scalar_lea.vmem [#allocation10], 56
    %s140 = scalar_lea.vmem [#allocation10], 64
    %s141 = scalar_lea.vmem [#allocation10], 72
    %s142 = scalar_lea.vmem [#allocation10], 80
    %s143 = scalar_lea.vmem [#allocation10], 88
    %s144 = scalar_lea.vmem [#allocation10], 96
    %s145 = scalar_lea.vmem [#allocation10], 104
    %s146 = scalar_lea.vmem [#allocation10], 112
    %s147 = scalar_lea.vmem [#allocation10], 120
    %148 = vxpose.xlu0.b32.start [1/16] %v132, 128
    %149 = vxpose.xlu0.b32.cont [2/16] 0, 128
    %150 = vxpose.xlu0.b32.cont [3/16] 0, 128
    %151 = vxpose.xlu0.b32.cont [4/16] 0, 128
    %152 = vxpose.xlu0.b32.cont [5/16] 0, 128
    %153 = vxpose.xlu0.b32.cont [6/16] 0, 128
    %154 = vxpose.xlu0.b32.cont [7/16] 0, 128
    %155 = vxpose.xlu0.b32.cont [8/16] 0, 128
    %156 = vxpose.xlu0.b32.cont [9/16] 0, 128
    %157 = vxpose.xlu0.b32.cont [10/16] 0, 128
    %158 = vxpose.xlu0.b32.cont [11/16] 0, 128
    %159 = vxpose.xlu0.b32.cont [12/16] 0, 128
    %160 = vxpose.xlu0.b32.cont [13/16] 0, 128
    %161 = vxpose.xlu0.b32.cont [14/16] 0, 128
    %162 = vxpose.xlu0.b32.cont [15/16] 0, 128
    %163 = vxpose.xlu0.b32.end [16/16] 0, 128
    %v164 = vpop.trf.xlu0
    %v165 = vpop.trf.xlu0
    %v166 = vpop.trf.xlu0
    %v167 = vpop.trf.xlu0
    %v168 = vpop.trf.xlu0
    %v169 = vpop.trf.xlu0
    %v170 = vpop.trf.xlu0
    %v171 = vpop.trf.xlu0
    %v172 = vpop.trf.xlu0
    %v173 = vpop.trf.xlu0
    %v174 = vpop.trf.xlu0
    %v175 = vpop.trf.xlu0
    %v176 = vpop.trf.xlu0
    %v177 = vpop.trf.xlu0
    %v178 = vpop.trf.xlu0
    %v179 = vpop.trf.xlu0
    %180 = vst [vmem:[#allocation8] sm:$0x1] %v164
    %s182 = sshllo.u32 0, 4
    %v184 = vld [vmem:[#allocation4] sm:%s182]
    %s185 = sshllo.u32 0, 4
    %186 = vst [vmem:[#allocation5] sm:%s185] %v184
    %s188 = sshllo.u32 0, 1
    %v190 = vld [vmem:[#allocation6] sm:%s188]
    %s191 = sshllo.u32 0, 1
    %192 = vst [vmem:[#allocation7] sm:%s191] %v190
    %s194 = sshllo.u32 0, 1
    %v196 = vld [vmem:[#allocation8] sm:%s194]
    %s197 = sshllo.u32 0, 1
    %198 = vst [vmem:[#allocation9] sm:%s197] %v196
    %p200 = scmp.gt.s32.totalorder 4, 0
    // Predicated region
    $region10: #{custom-call.11} parent=1 // pred_check
      %p201 = pneg %p200
    $region11: #{custom-call.11} parent=1 // pred_check_branch
      %203 = sbr.rel (%p201) target = $region13
    $region12: #{custom-call.11} parent=1 // pred_region
      %s204 = sshra.s32 4, 3
      %p205 = scmp.gt.s32.totalorder %s204, 0
      // Predicated region
      $region14: #{custom-call.11} parent=12 // pred_check
        %p206 = pneg %p205
      $region15: #{custom-call.11} parent=12 // pred_check_branch
        %208 = sbr.rel (%p206) target = $region17
      $region16: #{custom-call.11} parent=12 // pred_region
        %s209 = ssub.s32 %s204, 1
        %s210 = smul.u32 %s209, 128
        %s211 = sshra.s32 %s210, 4
        %s212 = scalar_lea.vmem [#allocation5], %s211
        %v213 = vld [vmem:[#allocation5] sm:$0xff]
        // While loop
        $region18: #{custom-call.11} parent=16 // loop_pre_header
          _
        $region19: #{custom-call.11} parent=16 // loop_header
          %s214 = sphi [#allocation5], %s236
          %s215 = sphi %s1, %s237
          %v216 = vphi %v213, %v238
          %s217 = ssub.s32 %s212, 64
          %p218 = scmp.gt.s32.totalorder %s214, %s217
        $region20: #{custom-call.11} parent=16 // loop_header_branch
          %220 = sbr.rel (%p218) target = $region24
        $region21: #{custom-call.11} parent=16 // loop_body
          %221 = vst [vmem:[%s215] sm:$0xff] %v216
          %v222 = vld [vmem:[%s214 + $0x8] sm:$0xff]
          %223 = vst [vmem:[%s215 + $0x8] sm:$0xff] %v222
          %v224 = vld [vmem:[%s214 + $0x10] sm:$0xff]
          %225 = vst [vmem:[%s215 + $0x10] sm:$0xff] %v224
          %v226 = vld [vmem:[%s214 + $0x18] sm:$0xff]
          %227 = vst [vmem:[%s215 + $0x18] sm:$0xff] %v226
          %v228 = vld [vmem:[%s214 + $0x20] sm:$0xff]
          %229 = vst [vmem:[%s215 + $0x20] sm:$0xff] %v228
          %v230 = vld [vmem:[%s214 + $0x28] sm:$0xff]
          %231 = vst [vmem:[%s215 + $0x28] sm:$0xff] %v230
          %v232 = vld [vmem:[%s214 + $0x30] sm:$0xff]
          %233 = vst [vmem:[%s215 + $0x30] sm:$0xff] %v232
          %v234 = vld [vmem:[%s214 + $0x38] sm:$0xff]
          %235 = vst [vmem:[%s215 + $0x38] sm:$0xff] %v234
        $region22: #{custom-call.11} parent=16 // loop_footer
          %s236 = scalar_lea.vmem %s214, 64
          %s237 = scalar_lea.vmem %s215, 64
          %v238 = vld [vmem:[%s214 + $0x40] sm:$0xff]
        $region23: #{custom-call.11} parent=16 // loop_footer_branch
          %239 = sbr.rel target = $region19
        $region24: #{custom-call.11} parent=16 // loop_exit
          _
        // While loop
        $region25: #{custom-call.11} parent=16 // loop_pre_header
          _
        $region26: #{custom-call.11} parent=16 // loop_header
          %s240 = sphi %s214, %s248
          %s241 = sphi %s215, %s249
          %v242 = vphi %v216, %v242
          %p243 = scmp.gt.s32.totalorder %s240, %s212
        $region27: #{custom-call.11} parent=16 // loop_header_branch
          %245 = sbr.rel (%p243) target = $region31
        $region28: #{custom-call.11} parent=16 // loop_body
          %v246 = vld [vmem:[%s240] sm:$0xff]
          %247 = vst [vmem:[%s241] sm:$0xff] %v246
        $region29: #{custom-call.11} parent=16 // loop_footer
          %s248 = scalar_lea.vmem %s240, 8
          %s249 = scalar_lea.vmem %s241, 8
        $region30: #{custom-call.11} parent=16 // loop_footer_branch
          %250 = sbr.rel target = $region26
        $region31: #{custom-call.11} parent=16 // loop_exit
          _
      $region17: #{custom-call.11} parent=12 // pred_fallthru
        _
      %s251 = sand.u32 4, 7
      %s252 = sshllo.u32 0, %s251
      %s253 = smul.u32 %s204, 128
      %s254 = sshra.s32 %s253, 4
      %s255 = scalar_lea.vmem %s1, %s254
      %s256 = smul.u32 %s204, 128
      %s257 = sshra.s32 %s256, 4
      %s258 = scalar_lea.vmem [#allocation5], %s257
      %v259 = vld [vmem:[%s258] sm:%s252]
      %260 = vst [vmem:[%s255] sm:%s252] %v259
    $region13: #{custom-call.11} parent=1 // pred_fallthru
      _
    // Predicated region
    $region32: #{custom-call.11} parent=1 // pred_check
      _
    $region33: #{custom-call.11} parent=1 // pred_check_branch
      %262 = sbr.rel (0) target = $region35
    $region34: #{custom-call.11} parent=1 // pred_region
      %s264 = ssub.s32 16, 16
      %265 = vsyncadd [#allocation3], %s264
      %s266 = sshll.u32 [#allocation7], 4
      %s267 = int_to_ptr.vmem [resolvable:$true] %s266
      %269 = dma.vmem_to_hbm [thread:$0]  %s267, 16, %s2, [#allocation3]
    $region35: #{custom-call.11} parent=1 // pred_fallthru
      _
    // Predicated region
    $region36: #{custom-call.11} parent=1 // pred_check
      _
    $region37: #{custom-call.11} parent=1 // pred_check_branch
      %271 = sbr.rel (0) target = $region39
    $region38: #{custom-call.11} parent=1 // pred_region
      %p273 = scmp.gt.s32.totalorder 1, 0
      // Predicated region
      $region40: #{custom-call.11} parent=38 // pred_check
        %p274 = pneg %p273
      $region41: #{custom-call.11} parent=38 // pred_check_branch
        %276 = sbr.rel (%p274) target = $region43
      $region42: #{custom-call.11} parent=38 // pred_region
        %s277 = sshra.s32 1, 3
        %p278 = scmp.gt.s32.totalorder %s277, 0
        // Predicated region
        $region44: #{custom-call.11} parent=42 // pred_check
          %p279 = pneg %p278
        $region45: #{custom-call.11} parent=42 // pred_check_branch
          %281 = sbr.rel (%p279) target = $region47
        $region46: #{custom-call.11} parent=42 // pred_region
          %s282 = ssub.s32 %s277, 1
          %s283 = smul.u32 %s282, 128
          %s284 = sshra.s32 %s283, 4
          %s285 = scalar_lea.vmem [#allocation9], %s284
          %v286 = vld [vmem:[#allocation9] sm:$0xff]
          // While loop
          $region48: #{custom-call.11} parent=46 // loop_pre_header
            _
          $region49: #{custom-call.11} parent=46 // loop_header
            %s287 = sphi [#allocation9], %s309
            %s288 = sphi %s3, %s310
            %v289 = vphi %v286, %v311
            %s290 = ssub.s32 %s285, 64
            %p291 = scmp.gt.s32.totalorder %s287, %s290
          $region50: #{custom-call.11} parent=46 // loop_header_branch
            %293 = sbr.rel (%p291) target = $region54
          $region51: #{custom-call.11} parent=46 // loop_body
            %294 = vst [vmem:[%s288] sm:$0xff] %v289
            %v295 = vld [vmem:[%s287 + $0x8] sm:$0xff]
            %296 = vst [vmem:[%s288 + $0x8] sm:$0xff] %v295
            %v297 = vld [vmem:[%s287 + $0x10] sm:$0xff]
            %298 = vst [vmem:[%s288 + $0x10] sm:$0xff] %v297
            %v299 = vld [vmem:[%s287 + $0x18] sm:$0xff]
            %300 = vst [vmem:[%s288 + $0x18] sm:$0xff] %v299
            %v301 = vld [vmem:[%s287 + $0x20] sm:$0xff]
            %302 = vst [vmem:[%s288 + $0x20] sm:$0xff] %v301
            %v303 = vld [vmem:[%s287 + $0x28] sm:$0xff]
            %304 = vst [vmem:[%s288 + $0x28] sm:$0xff] %v303
            %v305 = vld [vmem:[%s287 + $0x30] sm:$0xff]
            %306 = vst [vmem:[%s288 + $0x30] sm:$0xff] %v305
            %v307 = vld [vmem:[%s287 + $0x38] sm:$0xff]
            %308 = vst [vmem:[%s288 + $0x38] sm:$0xff] %v307
          $region52: #{custom-call.11} parent=46 // loop_footer
            %s309 = scalar_lea.vmem %s287, 64
            %s310 = scalar_lea.vmem %s288, 64
            %v311 = vld [vmem:[%s287 + $0x40] sm:$0xff]
          $region53: #{custom-call.11} parent=46 // loop_footer_branch
            %312 = sbr.rel target = $region49
          $region54: #{custom-call.11} parent=46 // loop_exit
            _
          // While loop
          $region55: #{custom-call.11} parent=46 // loop_pre_header
            _
          $region56: #{custom-call.11} parent=46 // loop_header
            %s313 = sphi %s287, %s321
            %s314 = sphi %s288, %s322
            %v315 = vphi %v289, %v315
            %p316 = scmp.gt.s32.totalorder %s313, %s285
          $region57: #{custom-call.11} parent=46 // loop_header_branch
            %318 = sbr.rel (%p316) target = $region61
          $region58: #{custom-call.11} parent=46 // loop_body
            %v319 = vld [vmem:[%s313] sm:$0xff]
            %320 = vst [vmem:[%s314] sm:$0xff] %v319
          $region59: #{custom-call.11} parent=46 // loop_footer
            %s321 = scalar_lea.vmem %s313, 8
            %s322 = scalar_lea.vmem %s314, 8
          $region60: #{custom-call.11} parent=46 // loop_footer_branch
            %323 = sbr.rel target = $region56
          $region61: #{custom-call.11} parent=46 // loop_exit
            _
        $region47: #{custom-call.11} parent=42 // pred_fallthru
          _
        %s324 = sand.u32 1, 7
        %s325 = sshllo.u32 0, %s324
        %s326 = smul.u32 %s277, 128
        %s327 = sshra.s32 %s326, 4
        %s328 = scalar_lea.vmem %s3, %s327
        %s329 = smul.u32 %s277, 128
        %s330 = sshra.s32 %s329, 4
        %s331 = scalar_lea.vmem [#allocation9], %s330
        %v332 = vld [vmem:[%s331] sm:%s325]
        %333 = vst [vmem:[%s328] sm:%s325] %v332
      $region43: #{custom-call.11} parent=38 // pred_fallthru
        _
    $region39: #{custom-call.11} parent=1 // pred_fallthru
      _
    // Predicated region
    $region62: #{custom-call.11} parent=1 // pred_check
      _
    $region63: #{custom-call.11} parent=1 // pred_check_branch
      %335 = sbr.rel (0) target = $region65
    $region64: #{custom-call.11} parent=1 // pred_region
      %336 = dma.done [#allocation3], 16
    $region65: #{custom-call.11} parent=1 // pred_fallthru
      _
    // Predicated region
    $region66: #{custom-call.11} parent=1 // pred_check
      _
    $region67: #{custom-call.11} parent=1 // pred_check_branch
      %338 = sbr.rel (0) target = $region69
    $region68: #{custom-call.11} parent=1 // pred_region
      _
    $region69: #{custom-call.11} parent=1 // pred_fallthru
      _
    %339 = vsyncpa [#allocation2], 1
    %340 = vsyncpa [#allocation3], 1

// kernel: custom-call.12
$region0: #{custom-call.12}
  %s0 = inlined_call_operand.vmem [shape: f32[1,4,4], index: 0, kind: input, shape index: {}]
  %s1 = inlined_call_operand.vmem [shape: f32[1,4,4], index: 1, kind: output, shape index: {}]
  $region1: #{custom-call.12} parent=0
    #allocation0 [shape = 'u8[4096]{0}', space=vmem, size = 0x1000, scoped, tag = 'operand span for operand 0']
    #allocation1 [shape = 'u8[2048]{0}', space=vmem, size = 0x800, scoped, tag = 'packed  for operand 0']
    #allocation2 [shape = 'u8[4096]{0}', space=vmem, size = 0x1000, scoped, tag = 'operand span for operand 1']
    #allocation3 [shape = 'u8[2048]{0}', space=vmem, size = 0x800, scoped, tag = 'packed  for operand 1']
    #allocation4 [shape = 'f32[4,4]{1,0}', space=vmem, size = 0x1000, scoped, tag = 'rescaled input a']
    // Predicated region
    $region2: #{custom-call.12} parent=1 // pred_check
      _
    $region3: #{custom-call.12} parent=1 // pred_check_branch
      %3 = sbr.rel (0) target = $region5
    $region4: #{custom-call.12} parent=1 // pred_region
      // Predicated region
      $region6: #{custom-call.12} parent=4 // pred_check
        _
      $region7: #{custom-call.12} parent=4 // pred_check_branch
        %5 = sbr.rel target = $region9
      $region8: #{custom-call.12} parent=4 // pred_region
        // Predicated region
        $region21: #{custom-call.12} parent=8 // pred_check
          _
        $region22: #{custom-call.12} parent=8 // pred_check_branch
          %20 = sbr.rel (0) target = $region24
        $region23: #{custom-call.12} parent=8 // pred_region
          loop: start=0, step=1, limit=1
          $region25: #{custom-call.12} parent=23 // loop_pre_header
            _
          $region26: #{custom-call.12} parent=23 // loop_header
            %s23 = sphi 0, %s27
            %p24 = scmp.ge.s32.totalorder %s23, 1
            %s28 = sphi %s0, %s0
            %s29 = sphi [#allocation1], [#allocation1]
          $region27: #{custom-call.12} parent=23 // loop_header_branch
            %26 = sbr.rel (%p24) target = $region31
          $region28: #{custom-call.12} parent=23 // loop_body
            %v30 = vld [vmem:[%s28] sm:$0xf]
            %31 = vst [vmem:[%s29] sm:$0xf] %v30
          $region29: #{custom-call.12} parent=23 // loop_footer
            %s27 = sadd.s32 1, %s23
          $region30: #{custom-call.12} parent=23 // loop_footer_branch
            %22 = sbr.rel target = $region26
          $region31: #{custom-call.12} parent=23 // loop_exit
            _
        $region24: #{custom-call.12} parent=8 // pred_fallthru
          _
      $region9: #{custom-call.12} parent=4 // pred_fallthru
        _
      // Predicated region
      $region10: #{custom-call.12} parent=4 // pred_check
        _
      $region11: #{custom-call.12} parent=4 // pred_check_branch
        %7 = sbr.rel (0) target = $region13
      $region12: #{custom-call.12} parent=4 // pred_region
        loop: start=0, step=1, limit=1
        $region14: #{custom-call.12} parent=12 // loop_pre_header
          _
        $region15: #{custom-call.12} parent=12 // loop_header
          %s10 = sphi 0, %s14
          %p11 = scmp.ge.s32.totalorder %s10, 1
          %s15 = sphi %s0, %s0
          %s16 = sphi [#allocation1], [#allocation1]
        $region16: #{custom-call.12} parent=12 // loop_header_branch
          %13 = sbr.rel (%p11) target = $region20
        $region17: #{custom-call.12} parent=12 // loop_body
          %v17 = vld [vmem:[%s15] sm:$0xf]
          %18 = vst [vmem:[%s16] sm:$0xf] %v17
        $region18: #{custom-call.12} parent=12 // loop_footer
          %s14 = sadd.s32 1, %s10
        $region19: #{custom-call.12} parent=12 // loop_footer_branch
          %9 = sbr.rel target = $region15
        $region20: #{custom-call.12} parent=12 // loop_exit
          _
      $region13: #{custom-call.12} parent=4 // pred_fallthru
        _
    $region5: #{custom-call.12} parent=1 // pred_fallthru
      _
    %32 = vnop
    %s34 = sshllo.u32 0, 4
    %v35 = vld [vmem:[#allocation1] sm:%s34]
    %36 = vst [vmem:[#allocation0] sm:%s34] %v35
    %v37 = vlaneseq
    %v38 = vand.u32 %v37, 127
    %vm39 = vcmp.lt.s32.totalorder %v38, 4
    %v40 = vlaneseq
    %v41 = vshrl.u32 %v40, 7
    %vm43 = vcmp.eq.s32.totalorder %v41, %v38
    %v44 = vld [vmem:[#allocation0] sm:$0xff]
    %v45 = vsel %vm43, %v44, 0.0
    %46 = vadd.xlane.f32.xlu0 %v45
    %v47 = vpop.xlane.xlu0 %46
    %vm48 = vcmp.le.s32.totalorder %v41, %v38
    %vm49 = vmand %vm48, %vm39
    %v50 = vsel %vm49, %v44, 0.0
    %v51 = vrcp.pop %v47
    %v52 = vmul.f32 %v50, %v51
    %53 = vst [vmem:[#allocation4] sm:$0xff] %v52
    %v54 = vlaneseq
    %v55 = vand.u32 %v54, 127
    %v56 = vlaneseq
    %v57 = vshrl.u32 %v56, 7
    %vm59 = vcmp.eq.s32.totalorder %v55, %v57
    %v60 = vlaneseq
    %v61 = vand.u32 %v60, 127
    %vm62 = vcmp.eq.s32.totalorder %v61, 3
    %v63 = vsel %vm62, 1.0, -1.0
    %v64 = vsel %vm59, %v63, 0.0
    %s65 = scalar_lea.vmem [#allocation4], 2
    %v66 = vld [vmem:[%s65] ss:$0 sm:$0xff]
    %v67 = vxor.u32 %v66, 2147483648
    %v68 = vlaneseq
    %v69 = vand.u32 %v68, 127
    %vm70 = vcmp.eq.s32.totalorder %v69, 2
    %v71 = vmul.f32 %v67, %v64
    %72 = vadd.xlane.f32.xlu0 %v71
    %v73 = vpop.xlane.xlu0 %72
    %v74 = vsel %vm70, %v73, %v64
    %s75 = scalar_lea.vmem [#allocation4], 1
    %v76 = vld [vmem:[%s75] ss:$0 sm:$0xff]
    %v77 = vxor.u32 %v76, 2147483648
    %v78 = vlaneseq
    %v79 = vand.u32 %v78, 127
    %vm80 = vcmp.eq.s32.totalorder %v79, 1
    %v81 = vmul.f32 %v77, %v74
    %82 = vadd.xlane.f32.xlu0 %v81
    %v83 = vpop.xlane.xlu0 %82
    %v84 = vsel %vm80, %v83, %v74
    %v85 = vld [vmem:[#allocation4] ss:$0 sm:$0xff]
    %v86 = vxor.u32 %v85, 2147483648
    %v87 = vlaneseq
    %v88 = vand.u32 %v87, 127
    %vm89 = vcmp.eq.s32.totalorder %v88, 0
    %v90 = vmul.f32 %v86, %v84
    %91 = vadd.xlane.f32.xlu0 %v90
    %v92 = vpop.xlane.xlu0 %91
    %v93 = vsel %vm89, %v92, %v84
    %v94 = vrcp.pop %v47
    %v95 = vmul.f32 %v93, %v94
    %vm96 = vweird.f32 %v47
    %v97 = vsel %vm96, %v93, %v95
    %98 = vst [vmem:[#allocation2] sm:$0xff] %v97
    %s100 = sshllo.u32 0, 4
    %v102 = vld [vmem:[#allocation2] sm:%s100]
    %s103 = sshllo.u32 0, 4
    %104 = vst [vmem:[#allocation3] sm:%s103] %v102
    // Predicated region
    $region32: #{custom-call.12} parent=1 // pred_check
      _
    $region33: #{custom-call.12} parent=1 // pred_check_branch
      %106 = sbr.rel (0) target = $region35
    $region34: #{custom-call.12} parent=1 // pred_region
      // Predicated region
      $region36: #{custom-call.12} parent=34 // pred_check
        _
      $region37: #{custom-call.12} parent=34 // pred_check_branch
        %108 = sbr.rel target = $region39
      $region38: #{custom-call.12} parent=34 // pred_region
        // Predicated region
        $region51: #{custom-call.12} parent=38 // pred_check
          _
        $region52: #{custom-call.12} parent=38 // pred_check_branch
          %123 = sbr.rel (0) target = $region54
        $region53: #{custom-call.12} parent=38 // pred_region
          loop: start=0, step=1, limit=1
          $region55: #{custom-call.12} parent=53 // loop_pre_header
            _
          $region56: #{custom-call.12} parent=53 // loop_header
            %s126 = sphi 0, %s130
            %p127 = scmp.ge.s32.totalorder %s126, 1
            %s131 = sphi [#allocation3], [#allocation3]
            %s132 = sphi %s1, %s1
          $region57: #{custom-call.12} parent=53 // loop_header_branch
            %129 = sbr.rel (%p127) target = $region61
          $region58: #{custom-call.12} parent=53 // loop_body
            %v133 = vld [vmem:[%s131] sm:$0xf]
            %134 = vst [vmem:[%s132] sm:$0xf] %v133
          $region59: #{custom-call.12} parent=53 // loop_footer
            %s130 = sadd.s32 1, %s126
          $region60: #{custom-call.12} parent=53 // loop_footer_branch
            %125 = sbr.rel target = $region56
          $region61: #{custom-call.12} parent=53 // loop_exit
            _
        $region54: #{custom-call.12} parent=38 // pred_fallthru
          _
      $region39: #{custom-call.12} parent=34 // pred_fallthru
        _
      // Predicated region
      $region40: #{custom-call.12} parent=34 // pred_check
        _
      $region41: #{custom-call.12} parent=34 // pred_check_branch
        %110 = sbr.rel (0) target = $region43
      $region42: #{custom-call.12} parent=34 // pred_region
        loop: start=0, step=1, limit=1
        $region44: #{custom-call.12} parent=42 // loop_pre_header
          _
        $region45: #{custom-call.12} parent=42 // loop_header
          %s113 = sphi 0, %s117
          %p114 = scmp.ge.s32.totalorder %s113, 1
          %s118 = sphi [#allocation3], [#allocation3]
          %s119 = sphi %s1, %s1
        $region46: #{custom-call.12} parent=42 // loop_header_branch
          %116 = sbr.rel (%p114) target = $region50
        $region47: #{custom-call.12} parent=42 // loop_body
          %v120 = vld [vmem:[%s118] sm:$0xf]
          %121 = vst [vmem:[%s119] sm:$0xf] %v120
        $region48: #{custom-call.12} parent=42 // loop_footer
          %s117 = sadd.s32 1, %s113
        $region49: #{custom-call.12} parent=42 // loop_footer_branch
          %112 = sbr.rel target = $region45
        $region50: #{custom-call.12} parent=42 // loop_exit
          _
      $region43: #{custom-call.12} parent=34 // pred_fallthru
        _
    $region35: #{custom-call.12} parent=1 // pred_fallthru
      _
    %135 = vnop

// kernel: custom-call.13
$region0: #{custom-call.13}
  %s0 = inlined_call_operand.vmem [shape: f32[1,4,4], index: 0, kind: input, shape index: {}]
  %s1 = inlined_call_operand.vmem [shape: f32[1,4,4], index: 1, kind: output, shape index: {}]
  $region1: #{custom-call.13} parent=0
    #allocation0 [shape = 'u8[4096]{0}', space=vmem, size = 0x1000, scoped, tag = 'operand span for operand 0']
    #allocation1 [shape = 'u8[2048]{0}', space=vmem, size = 0x800, scoped, tag = 'packed  for operand 0']
    #allocation2 [shape = 'u8[4096]{0}', space=vmem, size = 0x1000, scoped, tag = 'operand span for operand 1']
    #allocation3 [shape = 'u8[2048]{0}', space=vmem, size = 0x800, scoped, tag = 'packed  for operand 1']
    #allocation4 [shape = 'f32[4,4]{1,0}', space=vmem, size = 0x1000, scoped, tag = 'rescaled input a']
    // Predicated region
    $region2: #{custom-call.13} parent=1 // pred_check
      _
    $region3: #{custom-call.13} parent=1 // pred_check_branch
      %3 = sbr.rel (0) target = $region5
    $region4: #{custom-call.13} parent=1 // pred_region
      // Predicated region
      $region6: #{custom-call.13} parent=4 // pred_check
        _
      $region7: #{custom-call.13} parent=4 // pred_check_branch
        %5 = sbr.rel target = $region9
      $region8: #{custom-call.13} parent=4 // pred_region
        // Predicated region
        $region21: #{custom-call.13} parent=8 // pred_check
          _
        $region22: #{custom-call.13} parent=8 // pred_check_branch
          %20 = sbr.rel (0) target = $region24
        $region23: #{custom-call.13} parent=8 // pred_region
          loop: start=0, step=1, limit=1
          $region25: #{custom-call.13} parent=23 // loop_pre_header
            _
          $region26: #{custom-call.13} parent=23 // loop_header
            %s23 = sphi 0, %s27
            %p24 = scmp.ge.s32.totalorder %s23, 1
            %s28 = sphi %s0, %s0
            %s29 = sphi [#allocation1], [#allocation1]
          $region27: #{custom-call.13} parent=23 // loop_header_branch
            %26 = sbr.rel (%p24) target = $region31
          $region28: #{custom-call.13} parent=23 // loop_body
            %v30 = vld [vmem:[%s28] sm:$0xf]
            %31 = vst [vmem:[%s29] sm:$0xf] %v30
          $region29: #{custom-call.13} parent=23 // loop_footer
            %s27 = sadd.s32 1, %s23
          $region30: #{custom-call.13} parent=23 // loop_footer_branch
            %22 = sbr.rel target = $region26
          $region31: #{custom-call.13} parent=23 // loop_exit
            _
        $region24: #{custom-call.13} parent=8 // pred_fallthru
          _
      $region9: #{custom-call.13} parent=4 // pred_fallthru
        _
      // Predicated region
      $region10: #{custom-call.13} parent=4 // pred_check
        _
      $region11: #{custom-call.13} parent=4 // pred_check_branch
        %7 = sbr.rel (0) target = $region13
      $region12: #{custom-call.13} parent=4 // pred_region
        loop: start=0, step=1, limit=1
        $region14: #{custom-call.13} parent=12 // loop_pre_header
          _
        $region15: #{custom-call.13} parent=12 // loop_header
          %s10 = sphi 0, %s14
          %p11 = scmp.ge.s32.totalorder %s10, 1
          %s15 = sphi %s0, %s0
          %s16 = sphi [#allocation1], [#allocation1]
        $region16: #{custom-call.13} parent=12 // loop_header_branch
          %13 = sbr.rel (%p11) target = $region20
        $region17: #{custom-call.13} parent=12 // loop_body
          %v17 = vld [vmem:[%s15] sm:$0xf]
          %18 = vst [vmem:[%s16] sm:$0xf] %v17
        $region18: #{custom-call.13} parent=12 // loop_footer
          %s14 = sadd.s32 1, %s10
        $region19: #{custom-call.13} parent=12 // loop_footer_branch
          %9 = sbr.rel target = $region15
        $region20: #{custom-call.13} parent=12 // loop_exit
          _
      $region13: #{custom-call.13} parent=4 // pred_fallthru
        _
    $region5: #{custom-call.13} parent=1 // pred_fallthru
      _
    %32 = vnop
    %s34 = sshllo.u32 0, 4
    %v35 = vld [vmem:[#allocation1] sm:%s34]
    %36 = vst [vmem:[#allocation0] sm:%s34] %v35
    %v37 = vlaneseq
    %v38 = vand.u32 %v37, 127
    %vm39 = vcmp.lt.s32.totalorder %v38, 4
    %v40 = vlaneseq
    %v41 = vshrl.u32 %v40, 7
    %vm43 = vcmp.eq.s32.totalorder %v41, %v38
    %v44 = vld [vmem:[#allocation0] sm:$0xff]
    %v45 = vsel %vm43, %v44, 0.0
    %46 = vadd.xlane.f32.xlu0 %v45
    %v47 = vpop.xlane.xlu0 %46
    %vm48 = vcmp.ge.s32.totalorder %v41, %v38
    %vm49 = vmand %vm48, %vm39
    %v50 = vsel %vm49, %v44, 0.0
    %v51 = vrcp.pop %v47
    %v52 = vmul.f32 %v50, %v51
    %53 = vst [vmem:[#allocation4] sm:$0xff] %v52
    %v54 = vlaneseq
    %v55 = vand.u32 %v54, 127
    %v56 = vlaneseq
    %v57 = vshrl.u32 %v56, 7
    %vm59 = vcmp.eq.s32.totalorder %v55, %v57
    %v60 = vlaneseq
    %v61 = vand.u32 %v60, 127
    %vm62 = vcmp.eq.s32.totalorder %v61, 0
    %v63 = vsel %vm62, 1.0, -1.0
    %v64 = vsel %vm59, %v63, 0.0
    %s65 = scalar_lea.vmem [#allocation4], 1
    %v66 = vld [vmem:[%s65] ss:$0 sm:$0xff]
    %v67 = vxor.u32 %v66, 2147483648
    %v68 = vlaneseq
    %v69 = vand.u32 %v68, 127
    %vm70 = vcmp.eq.s32.totalorder %v69, 1
    %v71 = vmul.f32 %v67, %v64
    %72 = vadd.xlane.f32.xlu0 %v71
    %v73 = vpop.xlane.xlu0 %72
    %v74 = vsel %vm70, %v73, %v64
    %s75 = scalar_lea.vmem [#allocation4], 2
    %v76 = vld [vmem:[%s75] ss:$0 sm:$0xff]
    %v77 = vxor.u32 %v76, 2147483648
    %v78 = vlaneseq
    %v79 = vand.u32 %v78, 127
    %vm80 = vcmp.eq.s32.totalorder %v79, 2
    %v81 = vmul.f32 %v77, %v74
    %82 = vadd.xlane.f32.xlu0 %v81
    %v83 = vpop.xlane.xlu0 %82
    %v84 = vsel %vm80, %v83, %v74
    %s85 = scalar_lea.vmem [#allocation4], 3
    %v86 = vld [vmem:[%s85] ss:$0 sm:$0xff]
    %v87 = vxor.u32 %v86, 2147483648
    %v88 = vlaneseq
    %v89 = vand.u32 %v88, 127
    %vm90 = vcmp.eq.s32.totalorder %v89, 3
    %v91 = vmul.f32 %v87, %v84
    %92 = vadd.xlane.f32.xlu0 %v91
    %v93 = vpop.xlane.xlu0 %92
    %v94 = vsel %vm90, %v93, %v84
    %v95 = vrcp.pop %v47
    %v96 = vmul.f32 %v94, %v95
    %vm97 = vweird.f32 %v47
    %v98 = vsel %vm97, %v94, %v96
    %99 = vst [vmem:[#allocation2] sm:$0xff] %v98
    %s101 = sshllo.u32 0, 4
    %v103 = vld [vmem:[#allocation2] sm:%s101]
    %s104 = sshllo.u32 0, 4
    %105 = vst [vmem:[#allocation3] sm:%s104] %v103
    // Predicated region
    $region32: #{custom-call.13} parent=1 // pred_check
      _
    $region33: #{custom-call.13} parent=1 // pred_check_branch
      %107 = sbr.rel (0) target = $region35
    $region34: #{custom-call.13} parent=1 // pred_region
      // Predicated region
      $region36: #{custom-call.13} parent=34 // pred_check
        _
      $region37: #{custom-call.13} parent=34 // pred_check_branch
        %109 = sbr.rel target = $region39
      $region38: #{custom-call.13} parent=34 // pred_region
        // Predicated region
        $region51: #{custom-call.13} parent=38 // pred_check
          _
        $region52: #{custom-call.13} parent=38 // pred_check_branch
          %124 = sbr.rel (0) target = $region54
        $region53: #{custom-call.13} parent=38 // pred_region
          loop: start=0, step=1, limit=1
          $region55: #{custom-call.13} parent=53 // loop_pre_header
            _
          $region56: #{custom-call.13} parent=53 // loop_header
            %s127 = sphi 0, %s131
            %p128 = scmp.ge.s32.totalorder %s127, 1
            %s132 = sphi [#allocation3], [#allocation3]
            %s133 = sphi %s1, %s1
          $region57: #{custom-call.13} parent=53 // loop_header_branch
            %130 = sbr.rel (%p128) target = $region61
          $region58: #{custom-call.13} parent=53 // loop_body
            %v134 = vld [vmem:[%s132] sm:$0xf]
            %135 = vst [vmem:[%s133] sm:$0xf] %v134
          $region59: #{custom-call.13} parent=53 // loop_footer
            %s131 = sadd.s32 1, %s127
          $region60: #{custom-call.13} parent=53 // loop_footer_branch
            %126 = sbr.rel target = $region56
          $region61: #{custom-call.13} parent=53 // loop_exit
            _
        $region54: #{custom-call.13} parent=38 // pred_fallthru
          _
      $region39: #{custom-call.13} parent=34 // pred_fallthru
        _
      // Predicated region
      $region40: #{custom-call.13} parent=34 // pred_check
        _
      $region41: #{custom-call.13} parent=34 // pred_check_branch
        %111 = sbr.rel (0) target = $region43
      $region42: #{custom-call.13} parent=34 // pred_region
        loop: start=0, step=1, limit=1
        $region44: #{custom-call.13} parent=42 // loop_pre_header
          _
        $region45: #{custom-call.13} parent=42 // loop_header
          %s114 = sphi 0, %s118
          %p115 = scmp.ge.s32.totalorder %s114, 1
          %s119 = sphi [#allocation3], [#allocation3]
          %s120 = sphi %s1, %s1
        $region46: #{custom-call.13} parent=42 // loop_header_branch
          %117 = sbr.rel (%p115) target = $region50
        $region47: #{custom-call.13} parent=42 // loop_body
          %v121 = vld [vmem:[%s119] sm:$0xf]
          %122 = vst [vmem:[%s120] sm:$0xf] %v121
        $region48: #{custom-call.13} parent=42 // loop_footer
          %s118 = sadd.s32 1, %s114
        $region49: #{custom-call.13} parent=42 // loop_footer_branch
          %113 = sbr.rel target = $region45
        $region50: #{custom-call.13} parent=42 // loop_exit
          _
      $region43: #{custom-call.13} parent=34 // pred_fallthru
        _
    $region35: #{custom-call.13} parent=1 // pred_fallthru
      _
    %136 = vnop

// kernel: global_to_ego_flow.1
$region0: #{global_to_ego_flow.1}
  #allocation0 [shape = 'u32[]', space=smem, size = 0x4, offset = 0x4, fixed_abs, tag = 'smem constant byte address 0x4 - core index']
  #allocation1 [shape = 'u32[144,128]{1,0:T(1,128)}', space=vmem, size = 0x12000, scoped, tag = 'internal scratch']
  %s0 = inlined_call_operand.vmem [shape: f32[5,384], index: 0, kind: input, shape index: {}]
  %s1 = inlined_call_operand.vmem [shape: f32[256,384], index: 1, kind: input, shape index: {}]
  %s2 = inlined_call_operand.vmem [shape: f32[256,384], index: 2, kind: output, shape index: {}]
  %s3 = sld [smem:[#allocation0]]
  $region41: #{global_to_ego_flow.1} parent=0
    _
  %s5 = ssub.s32 1, %s3
  %s6 = scalar_select 0, %s5, %s3
  loop: start=0, step=1, limit=4
  $region2: #{global_to_ego_flow.1} parent=0 // loop_pre_header
    _
  $region3: #{global_to_ego_flow.1} parent=0 // loop_header
    %s8 = sphi 0, %s12
    %p9 = scmp.ge.s32.totalorder %s8, 4
    %s16 = sphi 0, %s16
    %s18 = sphi 0, %s16
    %s19 = sphi 0, %s18
    %s33 = sphi 0, %s19
    %s39 = sphi 0, %s41
    %s42 = sphi 0, %s39
    %s43 = sphi 0, %s42
    %s59 = sphi 0, %s43
    %s65 = sphi 0, %s67
    %s68 = sphi 0, %s65
    %s69 = sphi 0, %s68
    %s85 = sphi 0, %s69
  $region4: #{global_to_ego_flow.1} parent=0 // loop_header_branch
    %11 = sbr.rel (%p9) target = $region8
  $region5: #{global_to_ego_flow.1} parent=0 // loop_body
    %s13 = ssub.s32 %s8, 1
    %s14 = ssub.s32 %s8, 2
    %s15 = sadd.s32 %s8, 1
    %s17 = sadd.s32 %s16, 1
    %p20 = scmp.eq.s32.totalorder %s8, 1
    %p21 = scmp.ne.s32.totalorder %s16, %s18
    %p22 = scmp.eq.s32.totalorder %s8, 0
    %p23 = por %p21, %p22
    %p24 = scmp.ne.s32.totalorder %s16, %s18
    %p25 = scmp.eq.s32.totalorder %s13, 1
    %p26 = por %p24, %p25
    %p27 = scmp.ne.s32.totalorder %s18, %s19
    %p28 = scmp.eq.s32.totalorder %s13, 0
    %p29 = por %p27, %p28
    %p30 = scmp.ne.s32.totalorder %s18, %s19
    %p31 = scmp.eq.s32.totalorder %s14, 1
    %p32 = por %p30, %p31
    %p34 = scmp.ne.s32.totalorder %s19, %s33
    %p35 = scmp.eq.s32.totalorder %s14, 0
    %p36 = por %p34, %p35
    %s37 = ssub.s32 %s8, %s15
    %p38 = scmp.eq.s32.totalorder %s37, 0
    %s40 = sadd.s32 %s39, 1
    %s41 = scalar_select %p38, %s39, %s40
    %p44 = pneg %p38
    %p45 = scmp.eq.s32.totalorder %s8, 1
    %p46 = por %p44, %p45
    %p47 = scmp.ne.s32.totalorder %s39, %s42
    %p48 = scmp.eq.s32.totalorder %s8, 0
    %p49 = por %p47, %p48
    %p50 = scmp.ne.s32.totalorder %s39, %s42
    %p51 = scmp.eq.s32.totalorder %s13, 1
    %p52 = por %p50, %p51
    %p53 = scmp.ne.s32.totalorder %s42, %s43
    %p54 = scmp.eq.s32.totalorder %s13, 0
    %p55 = por %p53, %p54
    %p56 = scmp.ne.s32.totalorder %s42, %s43
    %p57 = scmp.eq.s32.totalorder %s14, 1
    %p58 = por %p56, %p57
    %p60 = scmp.ne.s32.totalorder %s43, %s59
    %p61 = scmp.eq.s32.totalorder %s14, 0
    %p62 = por %p60, %p61
    %s63 = ssub.s32 %s8, %s15
    %p64 = scmp.eq.s32.totalorder %s63, 0
    %s66 = sadd.s32 %s65, 1
    %s67 = scalar_select %p64, %s65, %s66
    %p70 = pneg %p64
    %p71 = scmp.eq.s32.totalorder %s8, 1
    %p72 = por %p70, %p71
    %p73 = scmp.ne.s32.totalorder %s65, %s68
    %p74 = scmp.eq.s32.totalorder %s8, 0
    %p75 = por %p73, %p74
    %p76 = scmp.ne.s32.totalorder %s65, %s68
    %p77 = scmp.eq.s32.totalorder %s13, 1
    %p78 = por %p76, %p77
    %p79 = scmp.ne.s32.totalorder %s68, %s69
    %p80 = scmp.eq.s32.totalorder %s13, 0
    %p81 = por %p79, %p80
    %p82 = scmp.ne.s32.totalorder %s68, %s69
    %p83 = scmp.eq.s32.totalorder %s14, 1
    %p84 = por %p82, %p83
    %p86 = scmp.ne.s32.totalorder %s69, %s85
    %p87 = scmp.eq.s32.totalorder %s14, 0
    %p88 = por %p86, %p87
    %p89 = scmp.le.s32.totalorder 1, %s8
    %p90 = scmp.lt.s32.totalorder %s8, 3
    %p91 = pnand %p89, %p90
    %p92 = pneg %p91
    // Predicated region
    $region9: #{global_to_ego_flow.1} parent=5 // pred_check
      _
    $region10: #{global_to_ego_flow.1} parent=5 // pred_check_branch
      %94 = sbr.rel (%p91) target = $region12
    $region11: #{global_to_ego_flow.1} parent=5 // pred_region
      %s95 = ssub.s32 %s8, 1
      // Predicated region
      $region13: #{global_to_ego_flow.1} parent=11 // pred_check
        %p96 = pneg %p29
      $region14: #{global_to_ego_flow.1} parent=11 // pred_check_branch
        %98 = sbr.rel (%p96) target = $region16
      $region15: #{global_to_ego_flow.1} parent=11 // pred_region
        _
      $region16: #{global_to_ego_flow.1} parent=11 // pred_fallthru
        _
    $region12: #{global_to_ego_flow.1} parent=5 // pred_fallthru
      _
    %p99 = scmp.lt.s32.totalorder %s8, 2
    // Predicated region
    $region17: #{global_to_ego_flow.1} parent=5 // pred_check
      %p100 = pneg %p99
    $region18: #{global_to_ego_flow.1} parent=5 // pred_check_branch
      %102 = sbr.rel (%p100) target = $region20
    $region19: #{global_to_ego_flow.1} parent=5 // pred_region
      // Predicated region
      $region21: #{global_to_ego_flow.1} parent=19 // pred_check
        %p103 = pneg %p49
      $region22: #{global_to_ego_flow.1} parent=19 // pred_check_branch
        %105 = sbr.rel (%p103) target = $region24
      $region23: #{global_to_ego_flow.1} parent=19 // pred_region
        %s106 = smul.u32 16, %s8
        %p107 = scmp.lt.s32.totalorder %s106, 31
        %s108 = scalar_select %p107, %s106, 31
        %s109 = smul.addr %s108, 3
        %s110 = smul.addr %s109, 8
        %s111 = scalar_lea.vmem %s1, %s110
        %s112 = smul.u32 16, %s8
      $region24: #{global_to_ego_flow.1} parent=19 // pred_fallthru
        _
    $region20: #{global_to_ego_flow.1} parent=5 // pred_fallthru
      _
    %p113 = scmp.le.s32.totalorder 1, %s8
    %p114 = scmp.lt.s32.totalorder %s8, 3
    %p115 = pnand %p113, %p114
    %p116 = pneg %p115
    // Predicated region
    $region25: #{global_to_ego_flow.1} parent=5 // pred_check
      _
    $region26: #{global_to_ego_flow.1} parent=5 // pred_check_branch
      %118 = sbr.rel (%p115) target = $region28
    $region27: #{global_to_ego_flow.1} parent=5 // pred_region
      %s119 = ssub.s32 %s8, 1
      %p120 = pneg %p29
      %p121 = pneg %p26
      %s122 = smul.u32 16, %s13
      %p123 = scmp.lt.s32.totalorder %s122, 31
      %s124 = scalar_select %p123, %s122, 31
      %s125 = smul.addr %s124, 3
      %s126 = smul.addr %s125, 8
      %s127 = scalar_lea.vmem %s1, %s126
      %p128 = pneg %p55
      %p129 = pneg %p52
      %p130 = pneg %p81
      %p131 = pneg %p78
      %s132 = smul.u32 16, %s13
      %p133 = scmp.lt.s32.totalorder %s132, 31
      %s134 = scalar_select %p133, %s132, 31
      %s135 = smul.addr %s134, 3
      %s136 = smul.addr %s135, 8
      %s137 = scalar_lea.vmem %s2, %s136
      %s138 = smul.u32 16, %s13
      %p139 = scmp.lt.s32.totalorder %s138, 31
      %s140 = scalar_select %p139, %s138, 31
      %s141 = smul.addr %s140, 3
      %s142 = smul.addr %s141, 8
      %s143 = scalar_lea.vmem %s1, %s142
      %s144 = smul.u32 16, %s13
      %s145 = smul.u32 16, %s13
      %p146 = scmp.lt.s32.totalorder %s145, 31
      %s147 = scalar_select %p146, %s145, 31
      %s148 = smul.addr %s147, 3
      %s149 = smul.addr %s148, 8
      %s150 = scalar_lea.vmem %s2, %s149
      %s151 = smul.u32 16, %s13
      %v152 = vld [vmem:[%s143] sm:$0xff]
      %v153 = vld [vmem:[%s143 + $0x8] sm:$0xff]
      %v154 = vld [vmem:[%s143 + $0x10] sm:$0xff]
      %v155 = vld [vmem:[%s143 + $0x18] sm:$0xff]
      %v156 = vld [vmem:[%s143 + $0x20] sm:$0xff]
      %v157 = vld [vmem:[%s143 + $0x28] sm:$0xff]
      %v158 = vld [vmem:[%s143 + $0x30] sm:$0xff]
      %v159 = vld [vmem:[%s143 + $0x38] sm:$0xff]
      %v160 = vld [vmem:[%s143 + $0x40] sm:$0xff]
      %v161 = vld [vmem:[%s143 + $0x48] sm:$0xff]
      %v162 = vld [vmem:[%s143 + $0x50] sm:$0xff]
      %v163 = vld [vmem:[%s143 + $0x58] sm:$0xff]
      %v164 = vld [vmem:[%s143 + $0x60] sm:$0xff]
      %v165 = vld [vmem:[%s143 + $0x68] sm:$0xff]
      %v166 = vld [vmem:[%s143 + $0x70] sm:$0xff]
      %v167 = vld [vmem:[%s143 + $0x78] sm:$0xff]
      %v168 = vld [vmem:[%s143 + $0x80] sm:$0xff]
      %v169 = vld [vmem:[%s143 + $0x88] sm:$0xff]
      %v170 = vld [vmem:[%s143 + $0x90] sm:$0xff]
      %v171 = vld [vmem:[%s143 + $0x98] sm:$0xff]
      %v172 = vld [vmem:[%s143 + $0xa0] sm:$0xff]
      %v173 = vld [vmem:[%s143 + $0xa8] sm:$0xff]
      %v174 = vld [vmem:[%s143 + $0xb0] sm:$0xff]
      %v175 = vld [vmem:[%s143 + $0xb8] sm:$0xff]
      %v176 = vld [vmem:[%s143 + $0xc0] sm:$0xff]
      %v177 = vld [vmem:[%s143 + $0xc8] sm:$0xff]
      %v178 = vld [vmem:[%s143 + $0xd0] sm:$0xff]
      %v179 = vld [vmem:[%s143 + $0xd8] sm:$0xff]
      %v180 = vld [vmem:[%s143 + $0xe0] sm:$0xff]
      %v181 = vld [vmem:[%s143 + $0xe8] sm:$0xff]
      %v182 = vld [vmem:[%s143 + $0xf0] sm:$0xff]
      %v183 = vld [vmem:[%s143 + $0xf8] sm:$0xff]
      %v184 = vld [vmem:[%s143 + $0x100] sm:$0xff]
      %v185 = vld [vmem:[%s143 + $0x108] sm:$0xff]
      %v186 = vld [vmem:[%s143 + $0x110] sm:$0xff]
      %v187 = vld [vmem:[%s143 + $0x118] sm:$0xff]
      %v188 = vld [vmem:[%s143 + $0x120] sm:$0xff]
      %v189 = vld [vmem:[%s143 + $0x128] sm:$0xff]
      %v190 = vld [vmem:[%s143 + $0x130] sm:$0xff]
      %v191 = vld [vmem:[%s143 + $0x138] sm:$0xff]
      %v192 = vld [vmem:[%s143 + $0x140] sm:$0xff]
      %v193 = vld [vmem:[%s143 + $0x148] sm:$0xff]
      %v194 = vld [vmem:[%s143 + $0x150] sm:$0xff]
      %v195 = vld [vmem:[%s143 + $0x158] sm:$0xff]
      %v196 = vld [vmem:[%s143 + $0x160] sm:$0xff]
      %v197 = vld [vmem:[%s143 + $0x168] sm:$0xff]
      %v198 = vld [vmem:[%s143 + $0x170] sm:$0xff]
      %v199 = vld [vmem:[%s143 + $0x178] sm:$0xff]
      %s200 = scalar_lea.vmem %s0, 2
      %v201 = vld [vmem:[%s200] ss:$8 sm:$0x7]
      %v203 = vlaneseq
      %v204 = vshrl.u32 %v203, 7
      %v205 = vsub.s32 0, %v204
      %v206 = vrot.slane %v201, %v205
      %v207 = vlaneseq
      %v208 = vshrl.u32 %v207, 7
      %v209 = vsub.s32 1, %v208
      %v210 = vrot.slane %v201, %v209
      %v211 = vlaneseq
      %v212 = vshrl.u32 %v211, 7
      %v213 = vsub.s32 2, %v212
      %v214 = vrot.slane %v201, %v213
      %v218 = vmul.f32 %v206, %v152
      %v219 = vmul.f32 %v210, %v153
      %v220 = vmul.f32 %v214, %v154
      %v221 = vmul.f32 %v206, %v155
      %v222 = vmul.f32 %v210, %v156
      %v223 = vmul.f32 %v214, %v157
      %v224 = vmul.f32 %v206, %v158
      %v225 = vmul.f32 %v210, %v159
      %v226 = vmul.f32 %v214, %v160
      %v227 = vmul.f32 %v206, %v161
      %v228 = vmul.f32 %v210, %v162
      %v229 = vmul.f32 %v214, %v163
      %v230 = vmul.f32 %v206, %v164
      %v231 = vmul.f32 %v210, %v165
      %v232 = vmul.f32 %v214, %v166
      %v233 = vmul.f32 %v206, %v167
      %v234 = vmul.f32 %v210, %v168
      %v235 = vmul.f32 %v214, %v169
      %v236 = vmul.f32 %v206, %v170
      %v237 = vmul.f32 %v210, %v171
      %v238 = vmul.f32 %v214, %v172
      %v239 = vmul.f32 %v206, %v173
      %v240 = vmul.f32 %v210, %v174
      %v241 = vmul.f32 %v214, %v175
      %v242 = vmul.f32 %v206, %v176
      %v243 = vmul.f32 %v210, %v177
      %v244 = vmul.f32 %v214, %v178
      %v245 = vmul.f32 %v206, %v179
      %v246 = vmul.f32 %v210, %v180
      %v247 = vmul.f32 %v214, %v181
      %v248 = vmul.f32 %v206, %v182
      %v249 = vmul.f32 %v210, %v183
      %v250 = vmul.f32 %v214, %v184
      %v251 = vmul.f32 %v206, %v185
      %v252 = vmul.f32 %v210, %v186
      %v253 = vmul.f32 %v214, %v187
      %v254 = vmul.f32 %v206, %v188
      %v255 = vmul.f32 %v210, %v189
      %v256 = vmul.f32 %v214, %v190
      %v257 = vmul.f32 %v206, %v191
      %v258 = vmul.f32 %v210, %v192
      %v259 = vmul.f32 %v214, %v193
      %v260 = vmul.f32 %v206, %v194
      %v261 = vmul.f32 %v210, %v195
      %v262 = vmul.f32 %v214, %v196
      %v263 = vmul.f32 %v206, %v197
      %v264 = vmul.f32 %v210, %v198
      %v265 = vmul.f32 %v214, %v199
      %v266 = vld [vmem:[%s0] ss:$8 sm:$0x7]
      %267 = vrot.lane.b32.xlu0 %v152, 126
      %v268 = vpop.permute.xlu0 %267
      %269 = vrot.lane.b32.xlu0 %v155, 126
      %v270 = vpop.permute.xlu0 %269
      %271 = vrot.lane.b32.xlu0 %v158, 126
      %v272 = vpop.permute.xlu0 %271
      %273 = vrot.lane.b32.xlu0 %v161, 126
      %v274 = vpop.permute.xlu0 %273
      %275 = vrot.lane.b32.xlu0 %v164, 126
      %v276 = vpop.permute.xlu0 %275
      %277 = vrot.lane.b32.xlu0 %v167, 126
      %v278 = vpop.permute.xlu0 %277
      %279 = vrot.lane.b32.xlu0 %v170, 126
      %v280 = vpop.permute.xlu0 %279
      %281 = vrot.lane.b32.xlu0 %v173, 126
      %v282 = vpop.permute.xlu0 %281
      %283 = vrot.lane.b32.xlu0 %v176, 126
      %v284 = vpop.permute.xlu0 %283
      %285 = vrot.lane.b32.xlu0 %v179, 126
      %v286 = vpop.permute.xlu0 %285
      %287 = vrot.lane.b32.xlu0 %v182, 126
      %v288 = vpop.permute.xlu0 %287
      %289 = vrot.lane.b32.xlu0 %v185, 126
      %v290 = vpop.permute.xlu0 %289
      %291 = vrot.lane.b32.xlu0 %v188, 126
      %v292 = vpop.permute.xlu0 %291
      %293 = vrot.lane.b32.xlu0 %v191, 126
      %v294 = vpop.permute.xlu0 %293
      %295 = vrot.lane.b32.xlu0 %v194, 126
      %v296 = vpop.permute.xlu0 %295
      %297 = vrot.lane.b32.xlu0 %v197, 126
      %v298 = vpop.permute.xlu0 %297
      %299 = vrot.lane.b32.xlu0 %v153, 126
      %v300 = vpop.permute.xlu0 %299
      %301 = vrot.lane.b32.xlu0 %v156, 126
      %v302 = vpop.permute.xlu0 %301
      %303 = vrot.lane.b32.xlu0 %v159, 126
      %v304 = vpop.permute.xlu0 %303
      %305 = vrot.lane.b32.xlu0 %v162, 126
      %v306 = vpop.permute.xlu0 %305
      %307 = vrot.lane.b32.xlu0 %v165, 126
      %v308 = vpop.permute.xlu0 %307
      %309 = vrot.lane.b32.xlu0 %v168, 126
      %v310 = vpop.permute.xlu0 %309
      %311 = vrot.lane.b32.xlu0 %v171, 126
      %v312 = vpop.permute.xlu0 %311
      %313 = vrot.lane.b32.xlu0 %v174, 126
      %v314 = vpop.permute.xlu0 %313
      %315 = vrot.lane.b32.xlu0 %v177, 126
      %v316 = vpop.permute.xlu0 %315
      %317 = vrot.lane.b32.xlu0 %v180, 126
      %v318 = vpop.permute.xlu0 %317
      %319 = vrot.lane.b32.xlu0 %v183, 126
      %v320 = vpop.permute.xlu0 %319
      %321 = vrot.lane.b32.xlu0 %v186, 126
      %v322 = vpop.permute.xlu0 %321
      %323 = vrot.lane.b32.xlu0 %v189, 126
      %v324 = vpop.permute.xlu0 %323
      %325 = vrot.lane.b32.xlu0 %v192, 126
      %v326 = vpop.permute.xlu0 %325
      %327 = vrot.lane.b32.xlu0 %v195, 126
      %v328 = vpop.permute.xlu0 %327
      %329 = vrot.lane.b32.xlu0 %v198, 126
      %v330 = vpop.permute.xlu0 %329
      %331 = vrot.lane.b32.xlu0 %v154, 126
      %v332 = vpop.permute.xlu0 %331
      %333 = vrot.lane.b32.xlu0 %v157, 126
      %v334 = vpop.permute.xlu0 %333
      %335 = vrot.lane.b32.xlu0 %v160, 126
      %v336 = vpop.permute.xlu0 %335
      %337 = vrot.lane.b32.xlu0 %v163, 126
      %v338 = vpop.permute.xlu0 %337
      %339 = vrot.lane.b32.xlu0 %v166, 126
      %v340 = vpop.permute.xlu0 %339
      %341 = vrot.lane.b32.xlu0 %v169, 126
      %v342 = vpop.permute.xlu0 %341
      %343 = vrot.lane.b32.xlu0 %v172, 126
      %v344 = vpop.permute.xlu0 %343
      %345 = vrot.lane.b32.xlu0 %v175, 126
      %v346 = vpop.permute.xlu0 %345
      %347 = vrot.lane.b32.xlu0 %v178, 126
      %v348 = vpop.permute.xlu0 %347
      %349 = vrot.lane.b32.xlu0 %v181, 126
      %v350 = vpop.permute.xlu0 %349
      %351 = vrot.lane.b32.xlu0 %v184, 126
      %v352 = vpop.permute.xlu0 %351
      %353 = vrot.lane.b32.xlu0 %v187, 126
      %v354 = vpop.permute.xlu0 %353
      %355 = vrot.lane.b32.xlu0 %v190, 126
      %v356 = vpop.permute.xlu0 %355
      %357 = vrot.lane.b32.xlu0 %v193, 126
      %v358 = vpop.permute.xlu0 %357
      %359 = vrot.lane.b32.xlu0 %v196, 126
      %v360 = vpop.permute.xlu0 %359
      %361 = vrot.lane.b32.xlu0 %v199, 126
      %v362 = vpop.permute.xlu0 %361
      %v363 = vlaneseq
      %v364 = vand.u32 %v363, 127
      %vm365 = vcmp.lt.s32.totalorder %v364, 126
      %v366 = vsel %vm365, %v300, %v332
      %v367 = vsel %vm365, %v302, %v334
      %v368 = vsel %vm365, %v304, %v336
      %v369 = vsel %vm365, %v306, %v338
      %v370 = vsel %vm365, %v308, %v340
      %v371 = vsel %vm365, %v310, %v342
      %v372 = vsel %vm365, %v312, %v344
      %v373 = vsel %vm365, %v314, %v346
      %v374 = vsel %vm365, %v316, %v348
      %v375 = vsel %vm365, %v318, %v350
      %v376 = vsel %vm365, %v320, %v352
      %v377 = vsel %vm365, %v322, %v354
      %v378 = vsel %vm365, %v324, %v356
      %v379 = vsel %vm365, %v326, %v358
      %v380 = vsel %vm365, %v328, %v360
      %v381 = vsel %vm365, %v330, %v362
      %v382 = vsel %vm365, %v268, %v300
      %v383 = vsel %vm365, %v270, %v302
      %v384 = vsel %vm365, %v272, %v304
      %v385 = vsel %vm365, %v274, %v306
      %v386 = vsel %vm365, %v276, %v308
      %v387 = vsel %vm365, %v278, %v310
      %v388 = vsel %vm365, %v280, %v312
      %v389 = vsel %vm365, %v282, %v314
      %v390 = vsel %vm365, %v284, %v316
      %v391 = vsel %vm365, %v286, %v318
      %v392 = vsel %vm365, %v288, %v320
      %v393 = vsel %vm365, %v290, %v322
      %v394 = vsel %vm365, %v292, %v324
      %v395 = vsel %vm365, %v294, %v326
      %v396 = vsel %vm365, %v296, %v328
      %v397 = vsel %vm365, %v298, %v330
      %v398 = vsel %vm365, %v332, %v268
      %v399 = vsel %vm365, %v334, %v270
      %v400 = vsel %vm365, %v336, %v272
      %v401 = vsel %vm365, %v338, %v274
      %v402 = vsel %vm365, %v340, %v276
      %v403 = vsel %vm365, %v342, %v278
      %v404 = vsel %vm365, %v344, %v280
      %v405 = vsel %vm365, %v346, %v282
      %v406 = vsel %vm365, %v348, %v284
      %v407 = vsel %vm365, %v350, %v286
      %v408 = vsel %vm365, %v352, %v288
      %v409 = vsel %vm365, %v354, %v290
      %v410 = vsel %vm365, %v356, %v292
      %v411 = vsel %vm365, %v358, %v294
      %v412 = vsel %vm365, %v360, %v296
      %v413 = vsel %vm365, %v362, %v298
      %v415 = vlaneseq
      %v416 = vshrl.u32 %v415, 7
      %v417 = vsub.s32 0, %v416
      %v418 = vrot.slane %v266, %v417
      %v419 = vlaneseq
      %v420 = vshrl.u32 %v419, 7
      %v421 = vsub.s32 1, %v420
      %v422 = vrot.slane %v266, %v421
      %v423 = vlaneseq
      %v424 = vshrl.u32 %v423, 7
      %v425 = vsub.s32 2, %v424
      %v426 = vrot.slane %v266, %v425
      %v430 = vmul.f32 %v418, %v382
      %v431 = vmul.f32 %v422, %v366
      %v432 = vmul.f32 %v426, %v398
      %v433 = vmul.f32 %v418, %v383
      %v434 = vmul.f32 %v422, %v367
      %v435 = vmul.f32 %v426, %v399
      %v436 = vmul.f32 %v418, %v384
      %v437 = vmul.f32 %v422, %v368
      %v438 = vmul.f32 %v426, %v400
      %v439 = vmul.f32 %v418, %v385
      %v440 = vmul.f32 %v422, %v369
      %v441 = vmul.f32 %v426, %v401
      %v442 = vmul.f32 %v418, %v386
      %v443 = vmul.f32 %v422, %v370
      %v444 = vmul.f32 %v426, %v402
      %v445 = vmul.f32 %v418, %v387
      %v446 = vmul.f32 %v422, %v371
      %v447 = vmul.f32 %v426, %v403
      %v448 = vmul.f32 %v418, %v388
      %v449 = vmul.f32 %v422, %v372
      %v450 = vmul.f32 %v426, %v404
      %v451 = vmul.f32 %v418, %v389
      %v452 = vmul.f32 %v422, %v373
      %v453 = vmul.f32 %v426, %v405
      %v454 = vmul.f32 %v418, %v390
      %v455 = vmul.f32 %v422, %v374
      %v456 = vmul.f32 %v426, %v406
      %v457 = vmul.f32 %v418, %v391
      %v458 = vmul.f32 %v422, %v375
      %v459 = vmul.f32 %v426, %v407
      %v460 = vmul.f32 %v418, %v392
      %v461 = vmul.f32 %v422, %v376
      %v462 = vmul.f32 %v426, %v408
      %v463 = vmul.f32 %v418, %v393
      %v464 = vmul.f32 %v422, %v377
      %v465 = vmul.f32 %v426, %v409
      %v466 = vmul.f32 %v418, %v394
      %v467 = vmul.f32 %v422, %v378
      %v468 = vmul.f32 %v426, %v410
      %v469 = vmul.f32 %v418, %v395
      %v470 = vmul.f32 %v422, %v379
      %v471 = vmul.f32 %v426, %v411
      %v472 = vmul.f32 %v418, %v396
      %v473 = vmul.f32 %v422, %v380
      %v474 = vmul.f32 %v426, %v412
      %v475 = vmul.f32 %v418, %v397
      %v476 = vmul.f32 %v422, %v381
      %v477 = vmul.f32 %v426, %v413
      %v478 = vadd.f32 %v218, %v430
      %v479 = vadd.f32 %v219, %v431
      %v480 = vadd.f32 %v220, %v432
      %v481 = vadd.f32 %v221, %v433
      %v482 = vadd.f32 %v222, %v434
      %v483 = vadd.f32 %v223, %v435
      %v484 = vadd.f32 %v224, %v436
      %v485 = vadd.f32 %v225, %v437
      %v486 = vadd.f32 %v226, %v438
      %v487 = vadd.f32 %v227, %v439
      %v488 = vadd.f32 %v228, %v440
      %v489 = vadd.f32 %v229, %v441
      %v490 = vadd.f32 %v230, %v442
      %v491 = vadd.f32 %v231, %v443
      %v492 = vadd.f32 %v232, %v444
      %v493 = vadd.f32 %v233, %v445
      %v494 = vadd.f32 %v234, %v446
      %v495 = vadd.f32 %v235, %v447
      %v496 = vadd.f32 %v236, %v448
      %v497 = vadd.f32 %v237, %v449
      %v498 = vadd.f32 %v238, %v450
      %v499 = vadd.f32 %v239, %v451
      %v500 = vadd.f32 %v240, %v452
      %v501 = vadd.f32 %v241, %v453
      %v502 = vadd.f32 %v242, %v454
      %v503 = vadd.f32 %v243, %v455
      %v504 = vadd.f32 %v244, %v456
      %v505 = vadd.f32 %v245, %v457
      %v506 = vadd.f32 %v246, %v458
      %v507 = vadd.f32 %v247, %v459
      %v508 = vadd.f32 %v248, %v460
      %v509 = vadd.f32 %v249, %v461
      %v510 = vadd.f32 %v250, %v462
      %v511 = vadd.f32 %v251, %v463
      %v512 = vadd.f32 %v252, %v464
      %v513 = vadd.f32 %v253, %v465
      %v514 = vadd.f32 %v254, %v466
      %v515 = vadd.f32 %v255, %v467
      %v516 = vadd.f32 %v256, %v468
      %v517 = vadd.f32 %v257, %v469
      %v518 = vadd.f32 %v258, %v470
      %v519 = vadd.f32 %v259, %v471
      %v520 = vadd.f32 %v260, %v472
      %v521 = vadd.f32 %v261, %v473
      %v522 = vadd.f32 %v262, %v474
      %v523 = vadd.f32 %v263, %v475
      %v524 = vadd.f32 %v264, %v476
      %v525 = vadd.f32 %v265, %v477
      %s526 = scalar_lea.vmem %s0, 1
      %v527 = vld [vmem:[%s526] ss:$8 sm:$0x7]
      %528 = vrot.lane.b32.xlu0 %v152, 127
      %v529 = vpop.permute.xlu0 %528
      %530 = vrot.lane.b32.xlu0 %v155, 127
      %v531 = vpop.permute.xlu0 %530
      %532 = vrot.lane.b32.xlu0 %v158, 127
      %v533 = vpop.permute.xlu0 %532
      %534 = vrot.lane.b32.xlu0 %v161, 127
      %v535 = vpop.permute.xlu0 %534
      %536 = vrot.lane.b32.xlu0 %v164, 127
      %v537 = vpop.permute.xlu0 %536
      %538 = vrot.lane.b32.xlu0 %v167, 127
      %v539 = vpop.permute.xlu0 %538
      %540 = vrot.lane.b32.xlu0 %v170, 127
      %v541 = vpop.permute.xlu0 %540
      %542 = vrot.lane.b32.xlu0 %v173, 127
      %v543 = vpop.permute.xlu0 %542
      %544 = vrot.lane.b32.xlu0 %v176, 127
      %v545 = vpop.permute.xlu0 %544
      %546 = vrot.lane.b32.xlu0 %v179, 127
      %v547 = vpop.permute.xlu0 %546
      %548 = vrot.lane.b32.xlu0 %v182, 127
      %v549 = vpop.permute.xlu0 %548
      %550 = vrot.lane.b32.xlu0 %v185, 127
      %v551 = vpop.permute.xlu0 %550
      %552 = vrot.lane.b32.xlu0 %v188, 127
      %v553 = vpop.permute.xlu0 %552
      %554 = vrot.lane.b32.xlu0 %v191, 127
      %v555 = vpop.permute.xlu0 %554
      %556 = vrot.lane.b32.xlu0 %v194, 127
      %v557 = vpop.permute.xlu0 %556
      %558 = vrot.lane.b32.xlu0 %v197, 127
      %v559 = vpop.permute.xlu0 %558
      %560 = vrot.lane.b32.xlu0 %v153, 127
      %v561 = vpop.permute.xlu0 %560
      %562 = vrot.lane.b32.xlu0 %v156, 127
      %v563 = vpop.permute.xlu0 %562
      %564 = vrot.lane.b32.xlu0 %v159, 127
      %v565 = vpop.permute.xlu0 %564
      %566 = vrot.lane.b32.xlu0 %v162, 127
      %v567 = vpop.permute.xlu0 %566
      %568 = vrot.lane.b32.xlu0 %v165, 127
      %v569 = vpop.permute.xlu0 %568
      %570 = vrot.lane.b32.xlu0 %v168, 127
      %v571 = vpop.permute.xlu0 %570
      %572 = vrot.lane.b32.xlu0 %v171, 127
      %v573 = vpop.permute.xlu0 %572
      %574 = vrot.lane.b32.xlu0 %v174, 127
      %v575 = vpop.permute.xlu0 %574
      %576 = vrot.lane.b32.xlu0 %v177, 127
      %v577 = vpop.permute.xlu0 %576
      %578 = vrot.lane.b32.xlu0 %v180, 127
      %v579 = vpop.permute.xlu0 %578
      %580 = vrot.lane.b32.xlu0 %v183, 127
      %v581 = vpop.permute.xlu0 %580
      %582 = vrot.lane.b32.xlu0 %v186, 127
      %v583 = vpop.permute.xlu0 %582
      %584 = vrot.lane.b32.xlu0 %v189, 127
      %v585 = vpop.permute.xlu0 %584
      %586 = vrot.lane.b32.xlu0 %v192, 127
      %v587 = vpop.permute.xlu0 %586
      %588 = vrot.lane.b32.xlu0 %v195, 127
      %v589 = vpop.permute.xlu0 %588
      %590 = vrot.lane.b32.xlu0 %v198, 127
      %v591 = vpop.permute.xlu0 %590
      %592 = vrot.lane.b32.xlu0 %v154, 127
      %v593 = vpop.permute.xlu0 %592
      %594 = vrot.lane.b32.xlu0 %v157, 127
      %v595 = vpop.permute.xlu0 %594
      %596 = vrot.lane.b32.xlu0 %v160, 127
      %v597 = vpop.permute.xlu0 %596
      %598 = vrot.lane.b32.xlu0 %v163, 127
      %v599 = vpop.permute.xlu0 %598
      %600 = vrot.lane.b32.xlu0 %v166, 127
      %v601 = vpop.permute.xlu0 %600
      %602 = vrot.lane.b32.xlu0 %v169, 127
      %v603 = vpop.permute.xlu0 %602
      %604 = vrot.lane.b32.xlu0 %v172, 127
      %v605 = vpop.permute.xlu0 %604
      %606 = vrot.lane.b32.xlu0 %v175, 127
      %v607 = vpop.permute.xlu0 %606
      %608 = vrot.lane.b32.xlu0 %v178, 127
      %v609 = vpop.permute.xlu0 %608
      %610 = vrot.lane.b32.xlu0 %v181, 127
      %v611 = vpop.permute.xlu0 %610
      %612 = vrot.lane.b32.xlu0 %v184, 127
      %v613 = vpop.permute.xlu0 %612
      %614 = vrot.lane.b32.xlu0 %v187, 127
      %v615 = vpop.permute.xlu0 %614
      %616 = vrot.lane.b32.xlu0 %v190, 127
      %v617 = vpop.permute.xlu0 %616
      %618 = vrot.lane.b32.xlu0 %v193, 127
      %v619 = vpop.permute.xlu0 %618
      %620 = vrot.lane.b32.xlu0 %v196, 127
      %v621 = vpop.permute.xlu0 %620
      %622 = vrot.lane.b32.xlu0 %v199, 127
      %v623 = vpop.permute.xlu0 %622
      %vm624 = vcmp.lt.s32.totalorder %v364, 127
      %v625 = vsel %vm624, %v561, %v593
      %v626 = vsel %vm624, %v563, %v595
      %v627 = vsel %vm624, %v565, %v597
      %v628 = vsel %vm624, %v567, %v599
      %v629 = vsel %vm624, %v569, %v601
      %v630 = vsel %vm624, %v571, %v603
      %v631 = vsel %vm624, %v573, %v605
      %v632 = vsel %vm624, %v575, %v607
      %v633 = vsel %vm624, %v577, %v609
      %v634 = vsel %vm624, %v579, %v611
      %v635 = vsel %vm624, %v581, %v613
      %v636 = vsel %vm624, %v583, %v615
      %v637 = vsel %vm624, %v585, %v617
      %v638 = vsel %vm624, %v587, %v619
      %v639 = vsel %vm624, %v589, %v621
      %v640 = vsel %vm624, %v591, %v623
      %v641 = vsel %vm624, %v529, %v561
      %v642 = vsel %vm624, %v531, %v563
      %v643 = vsel %vm624, %v533, %v565
      %v644 = vsel %vm624, %v535, %v567
      %v645 = vsel %vm624, %v537, %v569
      %v646 = vsel %vm624, %v539, %v571
      %v647 = vsel %vm624, %v541, %v573
      %v648 = vsel %vm624, %v543, %v575
      %v649 = vsel %vm624, %v545, %v577
      %v650 = vsel %vm624, %v547, %v579
      %v651 = vsel %vm624, %v549, %v581
      %v652 = vsel %vm624, %v551, %v583
      %v653 = vsel %vm624, %v553, %v585
      %v654 = vsel %vm624, %v555, %v587
      %v655 = vsel %vm624, %v557, %v589
      %v656 = vsel %vm624, %v559, %v591
      %v657 = vsel %vm624, %v593, %v529
      %v658 = vsel %vm624, %v595, %v531
      %v659 = vsel %vm624, %v597, %v533
      %v660 = vsel %vm624, %v599, %v535
      %v661 = vsel %vm624, %v601, %v537
      %v662 = vsel %vm624, %v603, %v539
      %v663 = vsel %vm624, %v605, %v541
      %v664 = vsel %vm624, %v607, %v543
      %v665 = vsel %vm624, %v609, %v545
      %v666 = vsel %vm624, %v611, %v547
      %v667 = vsel %vm624, %v613, %v549
      %v668 = vsel %vm624, %v615, %v551
      %v669 = vsel %vm624, %v617, %v553
      %v670 = vsel %vm624, %v619, %v555
      %v671 = vsel %vm624, %v621, %v557
      %v672 = vsel %vm624, %v623, %v559
      %v674 = vlaneseq
      %v675 = vshrl.u32 %v674, 7
      %v676 = vsub.s32 0, %v675
      %v677 = vrot.slane %v527, %v676
      %v678 = vlaneseq
      %v679 = vshrl.u32 %v678, 7
      %v680 = vsub.s32 1, %v679
      %v681 = vrot.slane %v527, %v680
      %v682 = vlaneseq
      %v683 = vshrl.u32 %v682, 7
      %v684 = vsub.s32 2, %v683
      %v685 = vrot.slane %v527, %v684
      %v689 = vmul.f32 %v677, %v641
      %v690 = vmul.f32 %v681, %v625
      %v691 = vmul.f32 %v685, %v657
      %v692 = vmul.f32 %v677, %v642
      %v693 = vmul.f32 %v681, %v626
      %v694 = vmul.f32 %v685, %v658
      %v695 = vmul.f32 %v677, %v643
      %v696 = vmul.f32 %v681, %v627
      %v697 = vmul.f32 %v685, %v659
      %v698 = vmul.f32 %v677, %v644
      %v699 = vmul.f32 %v681, %v628
      %v700 = vmul.f32 %v685, %v660
      %v701 = vmul.f32 %v677, %v645
      %v702 = vmul.f32 %v681, %v629
      %v703 = vmul.f32 %v685, %v661
      %v704 = vmul.f32 %v677, %v646
      %v705 = vmul.f32 %v681, %v630
      %v706 = vmul.f32 %v685, %v662
      %v707 = vmul.f32 %v677, %v647
      %v708 = vmul.f32 %v681, %v631
      %v709 = vmul.f32 %v685, %v663
      %v710 = vmul.f32 %v677, %v648
      %v711 = vmul.f32 %v681, %v632
      %v712 = vmul.f32 %v685, %v664
      %v713 = vmul.f32 %v677, %v649
      %v714 = vmul.f32 %v681, %v633
      %v715 = vmul.f32 %v685, %v665
      %v716 = vmul.f32 %v677, %v650
      %v717 = vmul.f32 %v681, %v634
      %v718 = vmul.f32 %v685, %v666
      %v719 = vmul.f32 %v677, %v651
      %v720 = vmul.f32 %v681, %v635
      %v721 = vmul.f32 %v685, %v667
      %v722 = vmul.f32 %v677, %v652
      %v723 = vmul.f32 %v681, %v636
      %v724 = vmul.f32 %v685, %v668
      %v725 = vmul.f32 %v677, %v653
      %v726 = vmul.f32 %v681, %v637
      %v727 = vmul.f32 %v685, %v669
      %v728 = vmul.f32 %v677, %v654
      %v729 = vmul.f32 %v681, %v638
      %v730 = vmul.f32 %v685, %v670
      %v731 = vmul.f32 %v677, %v655
      %v732 = vmul.f32 %v681, %v639
      %v733 = vmul.f32 %v685, %v671
      %v734 = vmul.f32 %v677, %v656
      %v735 = vmul.f32 %v681, %v640
      %v736 = vmul.f32 %v685, %v672
      %v737 = vadd.f32 %v478, %v689
      %v738 = vadd.f32 %v479, %v690
      %v739 = vadd.f32 %v480, %v691
      %v740 = vadd.f32 %v481, %v692
      %v741 = vadd.f32 %v482, %v693
      %v742 = vadd.f32 %v483, %v694
      %v743 = vadd.f32 %v484, %v695
      %v744 = vadd.f32 %v485, %v696
      %v745 = vadd.f32 %v486, %v697
      %v746 = vadd.f32 %v487, %v698
      %v747 = vadd.f32 %v488, %v699
      %v748 = vadd.f32 %v489, %v700
      %v749 = vadd.f32 %v490, %v701
      %v750 = vadd.f32 %v491, %v702
      %v751 = vadd.f32 %v492, %v703
      %v752 = vadd.f32 %v493, %v704
      %v753 = vadd.f32 %v494, %v705
      %v754 = vadd.f32 %v495, %v706
      %v755 = vadd.f32 %v496, %v707
      %v756 = vadd.f32 %v497, %v708
      %v757 = vadd.f32 %v498, %v709
      %v758 = vadd.f32 %v499, %v710
      %v759 = vadd.f32 %v500, %v711
      %v760 = vadd.f32 %v501, %v712
      %v761 = vadd.f32 %v502, %v713
      %v762 = vadd.f32 %v503, %v714
      %v763 = vadd.f32 %v504, %v715
      %v764 = vadd.f32 %v505, %v716
      %v765 = vadd.f32 %v506, %v717
      %v766 = vadd.f32 %v507, %v718
      %v767 = vadd.f32 %v508, %v719
      %v768 = vadd.f32 %v509, %v720
      %v769 = vadd.f32 %v510, %v721
      %v770 = vadd.f32 %v511, %v722
      %v771 = vadd.f32 %v512, %v723
      %v772 = vadd.f32 %v513, %v724
      %v773 = vadd.f32 %v514, %v725
      %v774 = vadd.f32 %v515, %v726
      %v775 = vadd.f32 %v516, %v727
      %v776 = vadd.f32 %v517, %v728
      %v777 = vadd.f32 %v518, %v729
      %v778 = vadd.f32 %v519, %v730
      %v779 = vadd.f32 %v520, %v731
      %v780 = vadd.f32 %v521, %v732
      %v781 = vadd.f32 %v522, %v733
      %v782 = vadd.f32 %v523, %v734
      %v783 = vadd.f32 %v524, %v735
      %v784 = vadd.f32 %v525, %v736
      %s785 = scalar_lea.vmem %s0, 3
      %v786 = vld [vmem:[%s785] ss:$8 sm:$0x7]
      %787 = vrot.lane.b32.xlu0 %v152, 1
      %v788 = vpop.permute.xlu0 %787
      %789 = vrot.lane.b32.xlu0 %v155, 1
      %v790 = vpop.permute.xlu0 %789
      %791 = vrot.lane.b32.xlu0 %v158, 1
      %v792 = vpop.permute.xlu0 %791
      %793 = vrot.lane.b32.xlu0 %v161, 1
      %v794 = vpop.permute.xlu0 %793
      %795 = vrot.lane.b32.xlu0 %v164, 1
      %v796 = vpop.permute.xlu0 %795
      %797 = vrot.lane.b32.xlu0 %v167, 1
      %v798 = vpop.permute.xlu0 %797
      %799 = vrot.lane.b32.xlu0 %v170, 1
      %v800 = vpop.permute.xlu0 %799
      %801 = vrot.lane.b32.xlu0 %v173, 1
      %v802 = vpop.permute.xlu0 %801
      %803 = vrot.lane.b32.xlu0 %v176, 1
      %v804 = vpop.permute.xlu0 %803
      %805 = vrot.lane.b32.xlu0 %v179, 1
      %v806 = vpop.permute.xlu0 %805
      %807 = vrot.lane.b32.xlu0 %v182, 1
      %v808 = vpop.permute.xlu0 %807
      %809 = vrot.lane.b32.xlu0 %v185, 1
      %v810 = vpop.permute.xlu0 %809
      %811 = vrot.lane.b32.xlu0 %v188, 1
      %v812 = vpop.permute.xlu0 %811
      %813 = vrot.lane.b32.xlu0 %v191, 1
      %v814 = vpop.permute.xlu0 %813
      %815 = vrot.lane.b32.xlu0 %v194, 1
      %v816 = vpop.permute.xlu0 %815
      %817 = vrot.lane.b32.xlu0 %v197, 1
      %v818 = vpop.permute.xlu0 %817
      %819 = vrot.lane.b32.xlu0 %v153, 1
      %v820 = vpop.permute.xlu0 %819
      %821 = vrot.lane.b32.xlu0 %v156, 1
      %v822 = vpop.permute.xlu0 %821
      %823 = vrot.lane.b32.xlu0 %v159, 1
      %v824 = vpop.permute.xlu0 %823
      %825 = vrot.lane.b32.xlu0 %v162, 1
      %v826 = vpop.permute.xlu0 %825
      %827 = vrot.lane.b32.xlu0 %v165, 1
      %v828 = vpop.permute.xlu0 %827
      %829 = vrot.lane.b32.xlu0 %v168, 1
      %v830 = vpop.permute.xlu0 %829
      %831 = vrot.lane.b32.xlu0 %v171, 1
      %v832 = vpop.permute.xlu0 %831
      %833 = vrot.lane.b32.xlu0 %v174, 1
      %v834 = vpop.permute.xlu0 %833
      %835 = vrot.lane.b32.xlu0 %v177, 1
      %v836 = vpop.permute.xlu0 %835
      %837 = vrot.lane.b32.xlu0 %v180, 1
      %v838 = vpop.permute.xlu0 %837
      %839 = vrot.lane.b32.xlu0 %v183, 1
      %v840 = vpop.permute.xlu0 %839
      %841 = vrot.lane.b32.xlu0 %v186, 1
      %v842 = vpop.permute.xlu0 %841
      %843 = vrot.lane.b32.xlu0 %v189, 1
      %v844 = vpop.permute.xlu0 %843
      %845 = vrot.lane.b32.xlu0 %v192, 1
      %v846 = vpop.permute.xlu0 %845
      %847 = vrot.lane.b32.xlu0 %v195, 1
      %v848 = vpop.permute.xlu0 %847
      %849 = vrot.lane.b32.xlu0 %v198, 1
      %v850 = vpop.permute.xlu0 %849
      %851 = vrot.lane.b32.xlu0 %v154, 1
      %v852 = vpop.permute.xlu0 %851
      %853 = vrot.lane.b32.xlu0 %v157, 1
      %v854 = vpop.permute.xlu0 %853
      %855 = vrot.lane.b32.xlu0 %v160, 1
      %v856 = vpop.permute.xlu0 %855
      %857 = vrot.lane.b32.xlu0 %v163, 1
      %v858 = vpop.permute.xlu0 %857
      %859 = vrot.lane.b32.xlu0 %v166, 1
      %v860 = vpop.permute.xlu0 %859
      %861 = vrot.lane.b32.xlu0 %v169, 1
      %v862 = vpop.permute.xlu0 %861
      %863 = vrot.lane.b32.xlu0 %v172, 1
      %v864 = vpop.permute.xlu0 %863
      %865 = vrot.lane.b32.xlu0 %v175, 1
      %v866 = vpop.permute.xlu0 %865
      %867 = vrot.lane.b32.xlu0 %v178, 1
      %v868 = vpop.permute.xlu0 %867
      %869 = vrot.lane.b32.xlu0 %v181, 1
      %v870 = vpop.permute.xlu0 %869
      %871 = vrot.lane.b32.xlu0 %v184, 1
      %v872 = vpop.permute.xlu0 %871
      %873 = vrot.lane.b32.xlu0 %v187, 1
      %v874 = vpop.permute.xlu0 %873
      %875 = vrot.lane.b32.xlu0 %v190, 1
      %v876 = vpop.permute.xlu0 %875
      %877 = vrot.lane.b32.xlu0 %v193, 1
      %v878 = vpop.permute.xlu0 %877
      %879 = vrot.lane.b32.xlu0 %v196, 1
      %v880 = vpop.permute.xlu0 %879
      %881 = vrot.lane.b32.xlu0 %v199, 1
      %v882 = vpop.permute.xlu0 %881
      %vm883 = vcmp.lt.s32.totalorder %v364, 1
      %v884 = vsel %vm883, %v820, %v852
      %v885 = vsel %vm883, %v822, %v854
      %v886 = vsel %vm883, %v824, %v856
      %v887 = vsel %vm883, %v826, %v858
      %v888 = vsel %vm883, %v828, %v860
      %v889 = vsel %vm883, %v830, %v862
      %v890 = vsel %vm883, %v832, %v864
      %v891 = vsel %vm883, %v834, %v866
      %v892 = vsel %vm883, %v836, %v868
      %v893 = vsel %vm883, %v838, %v870
      %v894 = vsel %vm883, %v840, %v872
      %v895 = vsel %vm883, %v842, %v874
      %v896 = vsel %vm883, %v844, %v876
      %v897 = vsel %vm883, %v846, %v878
      %v898 = vsel %vm883, %v848, %v880
      %v899 = vsel %vm883, %v850, %v882
      %v900 = vsel %vm883, %v788, %v820
      %v901 = vsel %vm883, %v790, %v822
      %v902 = vsel %vm883, %v792, %v824
      %v903 = vsel %vm883, %v794, %v826
      %v904 = vsel %vm883, %v796, %v828
      %v905 = vsel %vm883, %v798, %v830
      %v906 = vsel %vm883, %v800, %v832
      %v907 = vsel %vm883, %v802, %v834
      %v908 = vsel %vm883, %v804, %v836
      %v909 = vsel %vm883, %v806, %v838
      %v910 = vsel %vm883, %v808, %v840
      %v911 = vsel %vm883, %v810, %v842
      %v912 = vsel %vm883, %v812, %v844
      %v913 = vsel %vm883, %v814, %v846
      %v914 = vsel %vm883, %v816, %v848
      %v915 = vsel %vm883, %v818, %v850
      %v916 = vsel %vm883, %v852, %v788
      %v917 = vsel %vm883, %v854, %v790
      %v918 = vsel %vm883, %v856, %v792
      %v919 = vsel %vm883, %v858, %v794
      %v920 = vsel %vm883, %v860, %v796
      %v921 = vsel %vm883, %v862, %v798
      %v922 = vsel %vm883, %v864, %v800
      %v923 = vsel %vm883, %v866, %v802
      %v924 = vsel %vm883, %v868, %v804
      %v925 = vsel %vm883, %v870, %v806
      %v926 = vsel %vm883, %v872, %v808
      %v927 = vsel %vm883, %v874, %v810
      %v928 = vsel %vm883, %v876, %v812
      %v929 = vsel %vm883, %v878, %v814
      %v930 = vsel %vm883, %v880, %v816
      %v931 = vsel %vm883, %v882, %v818
      %v933 = vlaneseq
      %v934 = vshrl.u32 %v933, 7
      %v935 = vsub.s32 0, %v934
      %v936 = vrot.slane %v786, %v935
      %v937 = vlaneseq
      %v938 = vshrl.u32 %v937, 7
      %v939 = vsub.s32 1, %v938
      %v940 = vrot.slane %v786, %v939
      %v941 = vlaneseq
      %v942 = vshrl.u32 %v941, 7
      %v943 = vsub.s32 2, %v942
      %v944 = vrot.slane %v786, %v943
      %v948 = vmul.f32 %v936, %v916
      %v949 = vmul.f32 %v940, %v900
      %v950 = vmul.f32 %v944, %v884
      %v951 = vmul.f32 %v936, %v917
      %v952 = vmul.f32 %v940, %v901
      %v953 = vmul.f32 %v944, %v885
      %v954 = vmul.f32 %v936, %v918
      %v955 = vmul.f32 %v940, %v902
      %v956 = vmul.f32 %v944, %v886
      %v957 = vmul.f32 %v936, %v919
      %v958 = vmul.f32 %v940, %v903
      %v959 = vmul.f32 %v944, %v887
      %v960 = vmul.f32 %v936, %v920
      %v961 = vmul.f32 %v940, %v904
      %v962 = vmul.f32 %v944, %v888
      %v963 = vmul.f32 %v936, %v921
      %v964 = vmul.f32 %v940, %v905
      %v965 = vmul.f32 %v944, %v889
      %v966 = vmul.f32 %v936, %v922
      %v967 = vmul.f32 %v940, %v906
      %v968 = vmul.f32 %v944, %v890
      %v969 = vmul.f32 %v936, %v923
      %v970 = vmul.f32 %v940, %v907
      %v971 = vmul.f32 %v944, %v891
      %v972 = vmul.f32 %v936, %v924
      %v973 = vmul.f32 %v940, %v908
      %v974 = vmul.f32 %v944, %v892
      %v975 = vmul.f32 %v936, %v925
      %v976 = vmul.f32 %v940, %v909
      %v977 = vmul.f32 %v944, %v893
      %v978 = vmul.f32 %v936, %v926
      %v979 = vmul.f32 %v940, %v910
      %v980 = vmul.f32 %v944, %v894
      %v981 = vmul.f32 %v936, %v927
      %v982 = vmul.f32 %v940, %v911
      %v983 = vmul.f32 %v944, %v895
      %v984 = vmul.f32 %v936, %v928
      %v985 = vmul.f32 %v940, %v912
      %v986 = vmul.f32 %v944, %v896
      %v987 = vmul.f32 %v936, %v929
      %v988 = vmul.f32 %v940, %v913
      %v989 = vmul.f32 %v944, %v897
      %v990 = vmul.f32 %v936, %v930
      %v991 = vmul.f32 %v940, %v914
      %v992 = vmul.f32 %v944, %v898
      %v993 = vmul.f32 %v936, %v931
      %v994 = vmul.f32 %v940, %v915
      %v995 = vmul.f32 %v944, %v899
      %v996 = vadd.f32 %v737, %v948
      %v997 = vadd.f32 %v738, %v949
      %v998 = vadd.f32 %v739, %v950
      %v999 = vadd.f32 %v740, %v951
      %v1000 = vadd.f32 %v741, %v952
      %v1001 = vadd.f32 %v742, %v953
      %v1002 = vadd.f32 %v743, %v954
      %v1003 = vadd.f32 %v744, %v955
      %v1004 = vadd.f32 %v745, %v956
      %v1005 = vadd.f32 %v746, %v957
      %v1006 = vadd.f32 %v747, %v958
      %v1007 = vadd.f32 %v748, %v959
      %v1008 = vadd.f32 %v749, %v960
      %v1009 = vadd.f32 %v750, %v961
      %v1010 = vadd.f32 %v751, %v962
      %v1011 = vadd.f32 %v752, %v963
      %v1012 = vadd.f32 %v753, %v964
      %v1013 = vadd.f32 %v754, %v965
      %v1014 = vadd.f32 %v755, %v966
      %v1015 = vadd.f32 %v756, %v967
      %v1016 = vadd.f32 %v757, %v968
      %v1017 = vadd.f32 %v758, %v969
      %v1018 = vadd.f32 %v759, %v970
      %v1019 = vadd.f32 %v760, %v971
      %v1020 = vadd.f32 %v761, %v972
      %v1021 = vadd.f32 %v762, %v973
      %v1022 = vadd.f32 %v763, %v974
      %v1023 = vadd.f32 %v764, %v975
      %v1024 = vadd.f32 %v765, %v976
      %v1025 = vadd.f32 %v766, %v977
      %v1026 = vadd.f32 %v767, %v978
      %v1027 = vadd.f32 %v768, %v979
      %v1028 = vadd.f32 %v769, %v980
      %v1029 = vadd.f32 %v770, %v981
      %v1030 = vadd.f32 %v771, %v982
      %v1031 = vadd.f32 %v772, %v983
      %v1032 = vadd.f32 %v773, %v984
      %v1033 = vadd.f32 %v774, %v985
      %v1034 = vadd.f32 %v775, %v986
      %v1035 = vadd.f32 %v776, %v987
      %v1036 = vadd.f32 %v777, %v988
      %v1037 = vadd.f32 %v778, %v989
      %v1038 = vadd.f32 %v779, %v990
      %v1039 = vadd.f32 %v780, %v991
      %v1040 = vadd.f32 %v781, %v992
      %v1041 = vadd.f32 %v782, %v993
      %v1042 = vadd.f32 %v783, %v994
      %v1043 = vadd.f32 %v784, %v995
      %s1044 = scalar_lea.vmem %s0, 4
      %v1045 = vld [vmem:[%s1044] ss:$8 sm:$0x7]
      %1046 = vrot.lane.b32.xlu0 %v152, 2
      %v1047 = vpop.permute.xlu0 %1046
      %1048 = vrot.lane.b32.xlu0 %v155, 2
      %v1049 = vpop.permute.xlu0 %1048
      %1050 = vrot.lane.b32.xlu0 %v158, 2
      %v1051 = vpop.permute.xlu0 %1050
      %1052 = vrot.lane.b32.xlu0 %v161, 2
      %v1053 = vpop.permute.xlu0 %1052
      %1054 = vrot.lane.b32.xlu0 %v164, 2
      %v1055 = vpop.permute.xlu0 %1054
      %1056 = vrot.lane.b32.xlu0 %v167, 2
      %v1057 = vpop.permute.xlu0 %1056
      %1058 = vrot.lane.b32.xlu0 %v170, 2
      %v1059 = vpop.permute.xlu0 %1058
      %1060 = vrot.lane.b32.xlu0 %v173, 2
      %v1061 = vpop.permute.xlu0 %1060
      %1062 = vrot.lane.b32.xlu0 %v176, 2
      %v1063 = vpop.permute.xlu0 %1062
      %1064 = vrot.lane.b32.xlu0 %v179, 2
      %v1065 = vpop.permute.xlu0 %1064
      %1066 = vrot.lane.b32.xlu0 %v182, 2
      %v1067 = vpop.permute.xlu0 %1066
      %1068 = vrot.lane.b32.xlu0 %v185, 2
      %v1069 = vpop.permute.xlu0 %1068
      %1070 = vrot.lane.b32.xlu0 %v188, 2
      %v1071 = vpop.permute.xlu0 %1070
      %1072 = vrot.lane.b32.xlu0 %v191, 2
      %v1073 = vpop.permute.xlu0 %1072
      %1074 = vrot.lane.b32.xlu0 %v194, 2
      %v1075 = vpop.permute.xlu0 %1074
      %1076 = vrot.lane.b32.xlu0 %v197, 2
      %v1077 = vpop.permute.xlu0 %1076
      %1078 = vrot.lane.b32.xlu0 %v153, 2
      %v1079 = vpop.permute.xlu0 %1078
      %1080 = vrot.lane.b32.xlu0 %v156, 2
      %v1081 = vpop.permute.xlu0 %1080
      %1082 = vrot.lane.b32.xlu0 %v159, 2
      %v1083 = vpop.permute.xlu0 %1082
      %1084 = vrot.lane.b32.xlu0 %v162, 2
      %v1085 = vpop.permute.xlu0 %1084
      %1086 = vrot.lane.b32.xlu0 %v165, 2
      %v1087 = vpop.permute.xlu0 %1086
      %1088 = vrot.lane.b32.xlu0 %v168, 2
      %v1089 = vpop.permute.xlu0 %1088
      %1090 = vrot.lane.b32.xlu0 %v171, 2
      %v1091 = vpop.permute.xlu0 %1090
      %1092 = vrot.lane.b32.xlu0 %v174, 2
      %v1093 = vpop.permute.xlu0 %1092
      %1094 = vrot.lane.b32.xlu0 %v177, 2
      %v1095 = vpop.permute.xlu0 %1094
      %1096 = vrot.lane.b32.xlu0 %v180, 2
      %v1097 = vpop.permute.xlu0 %1096
      %1098 = vrot.lane.b32.xlu0 %v183, 2
      %v1099 = vpop.permute.xlu0 %1098
      %1100 = vrot.lane.b32.xlu0 %v186, 2
      %v1101 = vpop.permute.xlu0 %1100
      %1102 = vrot.lane.b32.xlu0 %v189, 2
      %v1103 = vpop.permute.xlu0 %1102
      %1104 = vrot.lane.b32.xlu0 %v192, 2
      %v1105 = vpop.permute.xlu0 %1104
      %1106 = vrot.lane.b32.xlu0 %v195, 2
      %v1107 = vpop.permute.xlu0 %1106
      %1108 = vrot.lane.b32.xlu0 %v198, 2
      %v1109 = vpop.permute.xlu0 %1108
      %1110 = vrot.lane.b32.xlu0 %v154, 2
      %v1111 = vpop.permute.xlu0 %1110
      %1112 = vrot.lane.b32.xlu0 %v157, 2
      %v1113 = vpop.permute.xlu0 %1112
      %1114 = vrot.lane.b32.xlu0 %v160, 2
      %v1115 = vpop.permute.xlu0 %1114
      %1116 = vrot.lane.b32.xlu0 %v163, 2
      %v1117 = vpop.permute.xlu0 %1116
      %1118 = vrot.lane.b32.xlu0 %v166, 2
      %v1119 = vpop.permute.xlu0 %1118
      %1120 = vrot.lane.b32.xlu0 %v169, 2
      %v1121 = vpop.permute.xlu0 %1120
      %1122 = vrot.lane.b32.xlu0 %v172, 2
      %v1123 = vpop.permute.xlu0 %1122
      %1124 = vrot.lane.b32.xlu0 %v175, 2
      %v1125 = vpop.permute.xlu0 %1124
      %1126 = vrot.lane.b32.xlu0 %v178, 2
      %v1127 = vpop.permute.xlu0 %1126
      %1128 = vrot.lane.b32.xlu0 %v181, 2
      %v1129 = vpop.permute.xlu0 %1128
      %1130 = vrot.lane.b32.xlu0 %v184, 2
      %v1131 = vpop.permute.xlu0 %1130
      %1132 = vrot.lane.b32.xlu0 %v187, 2
      %v1133 = vpop.permute.xlu0 %1132
      %1134 = vrot.lane.b32.xlu0 %v190, 2
      %v1135 = vpop.permute.xlu0 %1134
      %1136 = vrot.lane.b32.xlu0 %v193, 2
      %v1137 = vpop.permute.xlu0 %1136
      %1138 = vrot.lane.b32.xlu0 %v196, 2
      %v1139 = vpop.permute.xlu0 %1138
      %1140 = vrot.lane.b32.xlu0 %v199, 2
      %v1141 = vpop.permute.xlu0 %1140
      %vm1142 = vcmp.lt.s32.totalorder %v364, 2
      %v1143 = vsel %vm1142, %v1079, %v1111
      %v1144 = vsel %vm1142, %v1081, %v1113
      %v1145 = vsel %vm1142, %v1083, %v1115
      %v1146 = vsel %vm1142, %v1085, %v1117
      %v1147 = vsel %vm1142, %v1087, %v1119
      %v1148 = vsel %vm1142, %v1089, %v1121
      %v1149 = vsel %vm1142, %v1091, %v1123
      %v1150 = vsel %vm1142, %v1093, %v1125
      %v1151 = vsel %vm1142, %v1095, %v1127
      %v1152 = vsel %vm1142, %v1097, %v1129
      %v1153 = vsel %vm1142, %v1099, %v1131
      %v1154 = vsel %vm1142, %v1101, %v1133
      %v1155 = vsel %vm1142, %v1103, %v1135
      %v1156 = vsel %vm1142, %v1105, %v1137
      %v1157 = vsel %vm1142, %v1107, %v1139
      %v1158 = vsel %vm1142, %v1109, %v1141
      %v1159 = vsel %vm1142, %v1047, %v1079
      %v1160 = vsel %vm1142, %v1049, %v1081
      %v1161 = vsel %vm1142, %v1051, %v1083
      %v1162 = vsel %vm1142, %v1053, %v1085
      %v1163 = vsel %vm1142, %v1055, %v1087
      %v1164 = vsel %vm1142, %v1057, %v1089
      %v1165 = vsel %vm1142, %v1059, %v1091
      %v1166 = vsel %vm1142, %v1061, %v1093
      %v1167 = vsel %vm1142, %v1063, %v1095
      %v1168 = vsel %vm1142, %v1065, %v1097
      %v1169 = vsel %vm1142, %v1067, %v1099
      %v1170 = vsel %vm1142, %v1069, %v1101
      %v1171 = vsel %vm1142, %v1071, %v1103
      %v1172 = vsel %vm1142, %v1073, %v1105
      %v1173 = vsel %vm1142, %v1075, %v1107
      %v1174 = vsel %vm1142, %v1077, %v1109
      %v1175 = vsel %vm1142, %v1111, %v1047
      %v1176 = vsel %vm1142, %v1113, %v1049
      %v1177 = vsel %vm1142, %v1115, %v1051
      %v1178 = vsel %vm1142, %v1117, %v1053
      %v1179 = vsel %vm1142, %v1119, %v1055
      %v1180 = vsel %vm1142, %v1121, %v1057
      %v1181 = vsel %vm1142, %v1123, %v1059
      %v1182 = vsel %vm1142, %v1125, %v1061
      %v1183 = vsel %vm1142, %v1127, %v1063
      %v1184 = vsel %vm1142, %v1129, %v1065
      %v1185 = vsel %vm1142, %v1131, %v1067
      %v1186 = vsel %vm1142, %v1133, %v1069
      %v1187 = vsel %vm1142, %v1135, %v1071
      %v1188 = vsel %vm1142, %v1137, %v1073
      %v1189 = vsel %vm1142, %v1139, %v1075
      %v1190 = vsel %vm1142, %v1141, %v1077
      %v1192 = vlaneseq
      %v1193 = vshrl.u32 %v1192, 7
      %v1194 = vsub.s32 0, %v1193
      %v1195 = vrot.slane %v1045, %v1194
      %v1196 = vlaneseq
      %v1197 = vshrl.u32 %v1196, 7
      %v1198 = vsub.s32 1, %v1197
      %v1199 = vrot.slane %v1045, %v1198
      %v1200 = vlaneseq
      %v1201 = vshrl.u32 %v1200, 7
      %v1202 = vsub.s32 2, %v1201
      %v1203 = vrot.slane %v1045, %v1202
      %v1207 = vmul.f32 %v1195, %v1175
      %v1208 = vmul.f32 %v1199, %v1159
      %v1209 = vmul.f32 %v1203, %v1143
      %v1210 = vmul.f32 %v1195, %v1176
      %v1211 = vmul.f32 %v1199, %v1160
      %v1212 = vmul.f32 %v1203, %v1144
      %v1213 = vmul.f32 %v1195, %v1177
      %v1214 = vmul.f32 %v1199, %v1161
      %v1215 = vmul.f32 %v1203, %v1145
      %v1216 = vmul.f32 %v1195, %v1178
      %v1217 = vmul.f32 %v1199, %v1162
      %v1218 = vmul.f32 %v1203, %v1146
      %v1219 = vmul.f32 %v1195, %v1179
      %v1220 = vmul.f32 %v1199, %v1163
      %v1221 = vmul.f32 %v1203, %v1147
      %v1222 = vmul.f32 %v1195, %v1180
      %v1223 = vmul.f32 %v1199, %v1164
      %v1224 = vmul.f32 %v1203, %v1148
      %v1225 = vmul.f32 %v1195, %v1181
      %v1226 = vmul.f32 %v1199, %v1165
      %v1227 = vmul.f32 %v1203, %v1149
      %v1228 = vmul.f32 %v1195, %v1182
      %v1229 = vmul.f32 %v1199, %v1166
      %v1230 = vmul.f32 %v1203, %v1150
      %v1231 = vmul.f32 %v1195, %v1183
      %v1232 = vmul.f32 %v1199, %v1167
      %v1233 = vmul.f32 %v1203, %v1151
      %v1234 = vmul.f32 %v1195, %v1184
      %v1235 = vmul.f32 %v1199, %v1168
      %v1236 = vmul.f32 %v1203, %v1152
      %v1237 = vmul.f32 %v1195, %v1185
      %v1238 = vmul.f32 %v1199, %v1169
      %v1239 = vmul.f32 %v1203, %v1153
      %v1240 = vmul.f32 %v1195, %v1186
      %v1241 = vmul.f32 %v1199, %v1170
      %v1242 = vmul.f32 %v1203, %v1154
      %v1243 = vmul.f32 %v1195, %v1187
      %v1244 = vmul.f32 %v1199, %v1171
      %v1245 = vmul.f32 %v1203, %v1155
      %v1246 = vmul.f32 %v1195, %v1188
      %v1247 = vmul.f32 %v1199, %v1172
      %v1248 = vmul.f32 %v1203, %v1156
      %v1249 = vmul.f32 %v1195, %v1189
      %v1250 = vmul.f32 %v1199, %v1173
      %v1251 = vmul.f32 %v1203, %v1157
      %v1252 = vmul.f32 %v1195, %v1190
      %v1253 = vmul.f32 %v1199, %v1174
      %v1254 = vmul.f32 %v1203, %v1158
      %v1255 = vadd.f32 %v996, %v1207
      %v1256 = vadd.f32 %v997, %v1208
      %v1257 = vadd.f32 %v998, %v1209
      %v1258 = vadd.f32 %v999, %v1210
      %v1259 = vadd.f32 %v1000, %v1211
      %v1260 = vadd.f32 %v1001, %v1212
      %v1261 = vadd.f32 %v1002, %v1213
      %v1262 = vadd.f32 %v1003, %v1214
      %v1263 = vadd.f32 %v1004, %v1215
      %v1264 = vadd.f32 %v1005, %v1216
      %v1265 = vadd.f32 %v1006, %v1217
      %v1266 = vadd.f32 %v1007, %v1218
      %v1267 = vadd.f32 %v1008, %v1219
      %v1268 = vadd.f32 %v1009, %v1220
      %v1269 = vadd.f32 %v1010, %v1221
      %v1270 = vadd.f32 %v1011, %v1222
      %v1271 = vadd.f32 %v1012, %v1223
      %v1272 = vadd.f32 %v1013, %v1224
      %v1273 = vadd.f32 %v1014, %v1225
      %v1274 = vadd.f32 %v1015, %v1226
      %v1275 = vadd.f32 %v1016, %v1227
      %v1276 = vadd.f32 %v1017, %v1228
      %v1277 = vadd.f32 %v1018, %v1229
      %v1278 = vadd.f32 %v1019, %v1230
      %v1279 = vadd.f32 %v1020, %v1231
      %v1280 = vadd.f32 %v1021, %v1232
      %v1281 = vadd.f32 %v1022, %v1233
      %v1282 = vadd.f32 %v1023, %v1234
      %v1283 = vadd.f32 %v1024, %v1235
      %v1284 = vadd.f32 %v1025, %v1236
      %v1285 = vadd.f32 %v1026, %v1237
      %v1286 = vadd.f32 %v1027, %v1238
      %v1287 = vadd.f32 %v1028, %v1239
      %v1288 = vadd.f32 %v1029, %v1240
      %v1289 = vadd.f32 %v1030, %v1241
      %v1290 = vadd.f32 %v1031, %v1242
      %v1291 = vadd.f32 %v1032, %v1243
      %v1292 = vadd.f32 %v1033, %v1244
      %v1293 = vadd.f32 %v1034, %v1245
      %v1294 = vadd.f32 %v1035, %v1246
      %v1295 = vadd.f32 %v1036, %v1247
      %v1296 = vadd.f32 %v1037, %v1248
      %v1297 = vadd.f32 %v1038, %v1249
      %v1298 = vadd.f32 %v1039, %v1250
      %v1299 = vadd.f32 %v1040, %v1251
      %v1300 = vadd.f32 %v1041, %v1252
      %v1301 = vadd.f32 %v1042, %v1253
      %v1302 = vadd.f32 %v1043, %v1254
      %1303 = vst [vmem:[%s150] sm:$0xff] %v1255
      %1304 = vst [vmem:[%s150 + $0x8] sm:$0xff] %v1256
      %1305 = vst [vmem:[%s150 + $0x10] sm:$0xff] %v1257
      %1306 = vst [vmem:[%s150 + $0x18] sm:$0xff] %v1258
      %1307 = vst [vmem:[%s150 + $0x20] sm:$0xff] %v1259
      %1308 = vst [vmem:[%s150 + $0x28] sm:$0xff] %v1260
      %1309 = vst [vmem:[%s150 + $0x30] sm:$0xff] %v1261
      %1310 = vst [vmem:[%s150 + $0x38] sm:$0xff] %v1262
      %1311 = vst [vmem:[%s150 + $0x40] sm:$0xff] %v1263
      %1312 = vst [vmem:[%s150 + $0x48] sm:$0xff] %v1264
      %1313 = vst [vmem:[%s150 + $0x50] sm:$0xff] %v1265
      %1314 = vst [vmem:[%s150 + $0x58] sm:$0xff] %v1266
      %1315 = vst [vmem:[%s150 + $0x60] sm:$0xff] %v1267
      %1316 = vst [vmem:[%s150 + $0x68] sm:$0xff] %v1268
      %1317 = vst [vmem:[%s150 + $0x70] sm:$0xff] %v1269
      %1318 = vst [vmem:[%s150 + $0x78] sm:$0xff] %v1270
      %1319 = vst [vmem:[%s150 + $0x80] sm:$0xff] %v1271
      %1320 = vst [vmem:[%s150 + $0x88] sm:$0xff] %v1272
      %1321 = vst [vmem:[%s150 + $0x90] sm:$0xff] %v1273
      %1322 = vst [vmem:[%s150 + $0x98] sm:$0xff] %v1274
      %1323 = vst [vmem:[%s150 + $0xa0] sm:$0xff] %v1275
      %1324 = vst [vmem:[%s150 + $0xa8] sm:$0xff] %v1276
      %1325 = vst [vmem:[%s150 + $0xb0] sm:$0xff] %v1277
      %1326 = vst [vmem:[%s150 + $0xb8] sm:$0xff] %v1278
      %1327 = vst [vmem:[%s150 + $0xc0] sm:$0xff] %v1279
      %1328 = vst [vmem:[%s150 + $0xc8] sm:$0xff] %v1280
      %1329 = vst [vmem:[%s150 + $0xd0] sm:$0xff] %v1281
      %1330 = vst [vmem:[%s150 + $0xd8] sm:$0xff] %v1282
      %1331 = vst [vmem:[%s150 + $0xe0] sm:$0xff] %v1283
      %1332 = vst [vmem:[%s150 + $0xe8] sm:$0xff] %v1284
      %1333 = vst [vmem:[%s150 + $0xf0] sm:$0xff] %v1285
      %1334 = vst [vmem:[%s150 + $0xf8] sm:$0xff] %v1286
      %1335 = vst [vmem:[%s150 + $0x100] sm:$0xff] %v1287
      %1336 = vst [vmem:[%s150 + $0x108] sm:$0xff] %v1288
      %1337 = vst [vmem:[%s150 + $0x110] sm:$0xff] %v1289
      %1338 = vst [vmem:[%s150 + $0x118] sm:$0xff] %v1290
      %1339 = vst [vmem:[%s150 + $0x120] sm:$0xff] %v1291
      %1340 = vst [vmem:[%s150 + $0x128] sm:$0xff] %v1292
      %1341 = vst [vmem:[%s150 + $0x130] sm:$0xff] %v1293
      %1342 = vst [vmem:[%s150 + $0x138] sm:$0xff] %v1294
      %1343 = vst [vmem:[%s150 + $0x140] sm:$0xff] %v1295
      %1344 = vst [vmem:[%s150 + $0x148] sm:$0xff] %v1296
      %1345 = vst [vmem:[%s150 + $0x150] sm:$0xff] %v1297
      %1346 = vst [vmem:[%s150 + $0x158] sm:$0xff] %v1298
      %1347 = vst [vmem:[%s150 + $0x160] sm:$0xff] %v1299
      %1348 = vst [vmem:[%s150 + $0x168] sm:$0xff] %v1300
      %1349 = vst [vmem:[%s150 + $0x170] sm:$0xff] %v1301
      %1350 = vst [vmem:[%s150 + $0x178] sm:$0xff] %v1302
      %s1351 = smul.u32 16, %s13
      %p1352 = scmp.lt.s32.totalorder %s1351, 31
      %s1353 = scalar_select %p1352, %s1351, 31
      %s1354 = smul.addr %s1353, 3
      %s1355 = smul.addr %s1354, 8
      %s1356 = scalar_lea.vmem %s2, %s1355
      // Predicated region
      $region29: #{global_to_ego_flow.1} parent=27 // pred_check
        %p1357 = pneg %p78
      $region30: #{global_to_ego_flow.1} parent=27 // pred_check_branch
        %1359 = sbr.rel (%p1357) target = $region32
      $region31: #{global_to_ego_flow.1} parent=27 // pred_region
        %s1360 = smul.u32 16, %s13
      $region32: #{global_to_ego_flow.1} parent=27 // pred_fallthru
        _
    $region28: #{global_to_ego_flow.1} parent=5 // pred_fallthru
      _
    %p1361 = scmp.le.s32.totalorder 2, %s8
    // Predicated region
    $region33: #{global_to_ego_flow.1} parent=5 // pred_check
      %p1362 = pneg %p1361
    $region34: #{global_to_ego_flow.1} parent=5 // pred_check_branch
      %1364 = sbr.rel (%p1362) target = $region36
    $region35: #{global_to_ego_flow.1} parent=5 // pred_region
      %s1365 = ssub.s32 %s8, 2
      // Predicated region
      $region37: #{global_to_ego_flow.1} parent=35 // pred_check
        %p1366 = pneg %p84
      $region38: #{global_to_ego_flow.1} parent=35 // pred_check_branch
        %1368 = sbr.rel (%p1366) target = $region40
      $region39: #{global_to_ego_flow.1} parent=35 // pred_region
        %s1369 = smul.u32 16, %s14
        %p1370 = scmp.lt.s32.totalorder %s1369, 31
        %s1371 = scalar_select %p1370, %s1369, 31
        %s1372 = smul.addr %s1371, 3
        %s1373 = smul.addr %s1372, 8
        %s1374 = scalar_lea.vmem %s2, %s1373
      $region40: #{global_to_ego_flow.1} parent=35 // pred_fallthru
        _
    $region36: #{global_to_ego_flow.1} parent=5 // pred_fallthru
      _
  $region6: #{global_to_ego_flow.1} parent=0 // loop_footer
    %s12 = sadd.s32 1, %s8
  $region7: #{global_to_ego_flow.1} parent=0 // loop_footer_branch
    %7 = sbr.rel target = $region3
  $region8: #{global_to_ego_flow.1} parent=0 // loop_exit
    _

</llo_original>
